<compile_context>
chip_gen: v7x
topology: tpu7x:2x2x1
jax: 0.10.0
libtpu: 0.0.40
codegen_flags: <defaults>
</compile_context>

<pallas_src>
import functools

import jax
import jax.numpy as jnp
from jax.experimental import pallas as pl
from jax.experimental.pallas import tpu as pltpu


def lstmnet_kernel(x_ref, w0big_ref, bbig_ref, wfused_ref,
                   fc1wT_ref, fc1b_ref, fc2wT_ref, fc2b_ref, out_ref,
                   *, n_layers, seq_len, batch):
    """Whole forward pass resident in VMEM.

    x_ref      : (n_waves*B, D)   time-major, batch-padded, L-1 zero timesteps appended
    w0big_ref  : (D, 4*L*H)       layer-0 input->gates in permuted layout, zeros for l>0
    bbig_ref   : (1, 4*L*H)       all layers' (b_ih+b_hh) in permuted layout
    wfused_ref : (L*H, 4*L*H)     block-bidiagonal recurrent weight (permuted columns)
    fc1wT_ref  : (2H, hidden)     fc1 weight, pre-transposed (un-split)
    fc1b_ref   : (1, hidden)
    fc2wT_ref  : (hidden, out)
    fc2b_ref   : (1, out)
    out_ref    : (B, out)
    """
    L, T, B = n_layers, seq_len, batch
    LH = wfused_ref.shape[0]
    H = LH // L
    n_waves = T + L - 1

    wfused = wfused_ref[...]

    # --- hoisted batched input projection; biases folded in once ------------
    # Permuted column layout: [i_0..i_{L-1} | f_* | g_* | o_*], each block LH wide.
    g_add = (jnp.dot(x_ref[...], w0big_ref[...],
                     preferred_element_type=jnp.float32)
             + bbig_ref[...])                                   # (n_waves*B, 4LH)

    # --- packed recurrent state: [c0|c1|...] / [h0|h1|...] -------------------
    c = jnp.zeros((B, LH), jnp.float32)
    h = jnp.zeros((B, LH), jnp.float32)

    top_prev = None   # top-layer h at t = T-2
    top_last = None   # top-layer h at t = T-1

    # Wavefront: at wave w, layer l computes timestep t = w - l.  One fused
    # matmul per wave covers every layer's gate pre-activation.
    for w in range(n_waves):
        add = g_add[w * B:(w + 1) * B, :]                       # aligned (8, 4LH) slab
        if w == 0:
            gates = add                                         # state is zero: skip dot
        else:
            gates = add + jnp.dot(h, wfused,
                                  preferred_element_type=jnp.float32)
        # two full-tile EUP passes, then wide (B, LH) slices
        sig = jax.nn.sigmoid(gates)
        th = jnp.tanh(gates)
        i_all = sig[:, 0 * LH:1 * LH]
        f_all = sig[:, 1 * LH:2 * LH]
        g_all = th[:, 2 * LH:3 * LH]
        o_all = sig[:, 3 * LH:4 * LH]
        c = f_all * c + i_all * g_all
        if w < L - 1:
            # warm-up: keep not-yet-active layers' state exactly zero
            mask = jnp.concatenate(
                [jnp.ones((B, (w + 1) * H), jnp.float32),
                 jnp.zeros((B, (L - 1 - w) * H), jnp.float32)], axis=1)
            c = c * mask
        h = o_all * jnp.tanh(c)
        if w == T + L - 3:
            top_prev = h[:, (L - 1) * H:]                       # top layer, t = T-2
        if w == T + L - 2:
            top_last = h[:, (L - 1) * H:]                       # top layer, t = T-1

    # --- head: tanh(out[:, -2:, :].view(B, -1)) -> fc1 -> tanh -> fc2 -------
    feat = jnp.tanh(jnp.concatenate([top_prev, top_last], axis=1))   # (B, 2H)
    # TODO(synk): nn.Dropout(p=0.5) treated as identity (inference mode).
    h1 = jnp.tanh(jnp.dot(feat, fc1wT_ref[...],
                          preferred_element_type=jnp.float32) + fc1b_ref[...])
    y = (jnp.dot(h1, fc2wT_ref[...], preferred_element_type=jnp.float32)
         + fc2b_ref[...])
    out_ref[...] = y.astype(out_ref.dtype)


def build_fused_weights(params, n_layers, input_dim):
    """Build the permuted/fused weights used by the kernel (wrapper-side, once)."""
    H = params["whh"].shape[-1]
    L = n_layers
    D = input_dim

    def gate_blocks(W):   # W: (4H, in) -> 4 transposed per-gate blocks (in, H)
        return [W[g * H:(g + 1) * H, :].T for g in range(4)]

    # Layer-0 input projection, permuted columns; zeros for layers >= 1.
    wih0_g = gate_blocks(params["wih0"])
    zeroD = jnp.zeros((D, H), jnp.float32)
    w0_cols = []
    for g in range(4):
        for l in range(L):
            w0_cols.append(wih0_g[g] if l == 0 else zeroD)
    W0_big = jnp.concatenate(w0_cols, axis=1)                   # (D, 4LH)

    # All biases (b_ih + b_hh already folded), permuted columns.
    b = params["b"]                                             # (L, 4H)
    b_parts = []
    for g in range(4):
        for l in range(L):
            b_parts.append(b[l, g * H:(g + 1) * H])
    b_big = jnp.concatenate(b_parts, axis=0)[None, :]           # (1, 4LH)

    # Fused recurrent weight: row block l' = packed-state layer, column block
    # (gate g, layer l).  l'==l -> whh[l], l'==l-1 -> wih[l], else 0.
    whh_g = [gate_blocks(params["whh"][l]) for l in range(L)]
    wih_g = [gate_blocks(params["wih_rest"][l - 1]) for l in range(1, L)]
    zeroH = jnp.zeros((H, H), jnp.float32)
    rows = []
    for lp in range(L):
        cols = []
        for g in range(4):
            for l in range(L):
                if lp == l:
                    cols.append(whh_g[l][g])
                elif lp == l - 1:
                    cols.append(wih_g[l - 1][g])
                else:
                    cols.append(zeroH)
        rows.append(jnp.concatenate(cols, axis=1))
    W_fused = jnp.concatenate(rows, axis=0)                     # (LH, 4LH)
    return W0_big, b_big, W_fused


def lstmnet_forward(x, params, n_layers):
    """x: (batch, seq, input_dim) float32 -> (batch, output_dim) float32."""
    B, T, D = x.shape
    assert T >= 2, "head consumes the last two timesteps"
    H = params["whh"].shape[-1]
    L = n_layers
    out_dim = params["fc2w"].shape[0]

    # Pad batch to the f32 sublane width so each per-wave slab is an aligned
    # (8, .) tile; append L-1 zero timesteps so cool-down waves read bias-only.
    B_pad = max(8, ((B + 7) // 8) * 8)
    n_waves = T + L - 1
    x_tm = jnp.transpose(x, (1, 0, 2)).astype(jnp.float32)      # (T, B, D)
    x_tm = jnp.pad(x_tm, ((0, L - 1), (0, B_pad - B), (0, 0)))  # (n_waves, B_pad, D)
    x_flat = x_tm.reshape(n_waves * B_pad, D)

    W0_big, b_big, W_fused = build_fused_weights(params, L, D)
    fc1wT = params["fc1w"].T                                    # (2H, hidden)
    fc2wT = params["fc2w"].T                                    # (hidden, out)

    vmem = pl.BlockSpec(memory_space=pltpu.MemorySpace.VMEM)
    kernel = functools.partial(lstmnet_kernel, n_layers=L, seq_len=T, batch=B_pad)
    out_pad = pl.pallas_call(
        kernel,
        out_shape=jax.ShapeDtypeStruct((B_pad, out_dim), jnp.float32),
        in_specs=[vmem] * 8,
        out_specs=vmem,
    )(x_flat, W0_big, b_big, W_fused,
      fc1wT, params["fc1b"], fc2wT, params["fc2b"])
    return out_pad[:B]


def lstmnet_reference(x, params, n_layers):
    """Pure-JAX reference matching the PyTorch forward semantics."""
    B, T, D = x.shape
    H = params["whh"].shape[-1]
    layer_in = x.astype(jnp.float32)             # (B, T, D)
    for l in range(n_layers):
        W_ih = params["wih0"] if l == 0 else params["wih_rest"][l - 1]
        W_hh = params["whh"][l]
        b = params["b"][l]
        h = jnp.zeros((B, H), jnp.float32)
        c = jnp.zeros((B, H), jnp.float32)
        outs = []
        for t in range(T):
            gates = layer_in[:, t, :] @ W_ih.T + h @ W_hh.T + b[None, :]
            i_g = jax.nn.sigmoid(gates[:, 0 * H:1 * H])
            f_g = jax.nn.sigmoid(gates[:, 1 * H:2 * H])
            g_g = jnp.tanh(gates[:, 2 * H:3 * H])
            o_g = jax.nn.sigmoid(gates[:, 3 * H:4 * H])
            c = f_g * c + i_g * g_g
            h = o_g * jnp.tanh(c)
            outs.append(h)
        layer_in = jnp.stack(outs, axis=1)        # (B, T, H)
    feat = jnp.tanh(layer_in[:, -2:, :].reshape(B, -1))
    h1 = jnp.tanh(feat @ params["fc1w"].T + params["fc1b"])
    return h1 @ params["fc2w"].T + params["fc2b"]


def init_params(key, input_dim, lstm_dim, hidden_dim, output_dim, n_layers):
    """Deterministic synthetic init (module uses nn.init.normal_ on weights)."""
    H = lstm_dim
    ks = iter(jax.random.split(key, 4 * n_layers + 8))
    nrm = lambda shape: jax.random.normal(next(ks), shape, jnp.float32)

    wih0 = nrm((4 * H, input_dim))
    wih_rest = jnp.stack([nrm((4 * H, H)) for _ in range(n_layers - 1)], axis=0) \
        if n_layers > 1 else jnp.zeros((0, 4 * H, H), jnp.float32)
    whh = jnp.stack([nrm((4 * H, H)) for _ in range(n_layers)], axis=0)
    # b = b_ih + b_hh (PyTorch LSTM has two bias vectors per layer)
    b = jnp.stack([nrm((4 * H,)) + nrm((4 * H,)) for _ in range(n_layers)], axis=0)

    fc1w = nrm((hidden_dim, 2 * H))
    fc1b = nrm((1, hidden_dim))
    fc2w = nrm((output_dim, hidden_dim))
    fc2b = nrm((1, output_dim))
    return dict(wih0=wih0, wih_rest=wih_rest, whh=whh, b=b,
                fc1w=fc1w, fc1b=fc1b, fc2w=fc2w, fc2b=fc2b)


if __name__ == "__main__":
    # Small, forward-consistent shapes.
    batch, seq = 2, 8
    input_dim, lstm_dim, hidden_dim, output_dim, n_layers = 16, 32, 32, 4, 2

    key = jax.random.PRNGKey(0)
    k_x, k_p = jax.random.split(key)
    x = jax.random.normal(k_x, (batch, seq, input_dim), jnp.float32)
    params = init_params(k_p, input_dim, lstm_dim, hidden_dim, output_dim, n_layers)

    out = lstmnet_forward(x, params, n_layers)
    out = jax.block_until_ready(out)

    ref = lstmnet_reference(x, params, n_layers)
    assert out.shape == (batch, output_dim), out.shape
    assert jnp.allclose(out, ref, atol=2e-4, rtol=2e-4), \
        f"max abs err {jnp.max(jnp.abs(out - ref))}"
    print("KERNEL_OK")
</pallas_src>

<mosaic_0001>
module attributes {stable_mosaic.version = 11 : i64} {
  func.func @lstmnet_kernel(%arg0: memref<72x16xf32, #tpu.memory_space<vmem>>, %arg1: memref<16x256xf32, #tpu.memory_space<vmem>>, %arg2: memref<1x256xf32, #tpu.memory_space<vmem>>, %arg3: memref<64x256xf32, #tpu.memory_space<vmem>>, %arg4: memref<64x32xf32, #tpu.memory_space<vmem>>, %arg5: memref<1x32xf32, #tpu.memory_space<vmem>>, %arg6: memref<32x4xf32, #tpu.memory_space<vmem>>, %arg7: memref<1x4xf32, #tpu.memory_space<vmem>>, %arg8: memref<8x4xf32, #tpu.memory_space<vmem>>) attributes {dimension_semantics = [], scalar_prefetch = 0 : i64, scratch_operands = 0 : i64, tpu.core_type = #tpu.core_type<tc>} {
    %c0 = arith.constant 0 : index
    %c0_0 = arith.constant 0 : index
    %0 = vector.load %arg3[%c0, %c0_0] : memref<64x256xf32, #tpu.memory_space<vmem>>, vector<64x256xf32>
    %c0_1 = arith.constant 0 : index
    %c0_2 = arith.constant 0 : index
    %1 = vector.load %arg0[%c0_1, %c0_2] : memref<72x16xf32, #tpu.memory_space<vmem>>, vector<72x16xf32>
    %c0_3 = arith.constant 0 : index
    %c0_4 = arith.constant 0 : index
    %2 = vector.load %arg1[%c0_3, %c0_4] : memref<16x256xf32, #tpu.memory_space<vmem>>, vector<16x256xf32>
    %cst = arith.constant dense<0.000000e+00> : vector<72x256xf32>
    %3 = tpu.matmul %1, %2, %cst {dimension_numbers = #tpu.dot_dimension_numbers<[1], [0], [0], [1], [0, 0, 1, 1], [], []>} : vector<72x16xf32>, vector<16x256xf32>, vector<72x256xf32> -> vector<72x256xf32>
    %c0_5 = arith.constant 0 : index
    %c0_6 = arith.constant 0 : index
    %4 = vector.load %arg2[%c0_5, %c0_6] : memref<1x256xf32, #tpu.memory_space<vmem>>, vector<1x256xf32>
    %5 = vector.broadcast %4 : vector<1x256xf32> to vector<72x256xf32>
    %6 = arith.addf %3, %5 : vector<72x256xf32>
    %cst_7 = arith.constant 0.000000e+00 : f32
    %7 = vector.broadcast %cst_7 : f32 to vector<8x64xf32>
    %8 = vector.extract_strided_slice %6 {offsets = [0, 0], sizes = [8, 256], strides = [1, 1]} : vector<72x256xf32> to vector<8x256xf32>
    %9 = arith.negf %8 : vector<8x256xf32>
    %10 = math.exp %9 : vector<8x256xf32>
    %cst_8 = arith.constant 1.000000e+00 : f32
    %11 = vector.broadcast %cst_8 : f32 to vector<8x256xf32>
    %12 = arith.addf %11, %10 : vector<8x256xf32>
    %13 = arith.divf %11, %12 : vector<8x256xf32>
    %14 = math.tanh %8 : vector<8x256xf32>
    %15 = vector.extract_strided_slice %13 {offsets = [0, 0], sizes = [8, 64], strides = [1, 1]} : vector<8x256xf32> to vector<8x64xf32>
    %16 = vector.extract_strided_slice %13 {offsets = [0, 64], sizes = [8, 64], strides = [1, 1]} : vector<8x256xf32> to vector<8x64xf32>
    %17 = vector.extract_strided_slice %14 {offsets = [0, 128], sizes = [8, 64], strides = [1, 1]} : vector<8x256xf32> to vector<8x64xf32>
    %18 = vector.extract_strided_slice %13 {offsets = [0, 192], sizes = [8, 64], strides = [1, 1]} : vector<8x256xf32> to vector<8x64xf32>
    %19 = arith.mulf %16, %7 : vector<8x64xf32>
    %20 = arith.mulf %15, %17 : vector<8x64xf32>
    %21 = arith.addf %19, %20 : vector<8x64xf32>
    %cst_9 = arith.constant 1.000000e+00 : f32
    %22 = vector.broadcast %cst_9 : f32 to vector<8x32xf32>
    %cst_10 = arith.constant 0.000000e+00 : f32
    %23 = vector.broadcast %cst_10 : f32 to vector<8x32xf32>
    %24 = tpu.concatenate %22, %23 in 1 : vector<8x32xf32>, vector<8x32xf32> -> vector<8x64xf32>
    %25 = arith.mulf %21, %24 : vector<8x64xf32>
    %26 = math.tanh %25 : vector<8x64xf32>
    %27 = arith.mulf %18, %26 : vector<8x64xf32>
    %28 = vector.extract_strided_slice %6 {offsets = [8, 0], sizes = [8, 256], strides = [1, 1]} : vector<72x256xf32> to vector<8x256xf32>
    %cst_11 = arith.constant dense<0.000000e+00> : vector<8x256xf32>
    %29 = tpu.matmul %27, %0, %cst_11 {dimension_numbers = #tpu.dot_dimension_numbers<[1], [0], [0], [1], [0, 0, 1, 1], [], []>} : vector<8x64xf32>, vector<64x256xf32>, vector<8x256xf32> -> vector<8x256xf32>
    %30 = arith.addf %28, %29 : vector<8x256xf32>
    %31 = arith.negf %30 : vector<8x256xf32>
    %32 = math.exp %31 : vector<8x256xf32>
    %cst_12 = arith.constant 1.000000e+00 : f32
    %33 = vector.broadcast %cst_12 : f32 to vector<8x256xf32>
    %34 = arith.addf %33, %32 : vector<8x256xf32>
    %35 = arith.divf %33, %34 : vector<8x256xf32>
    %36 = math.tanh %30 : vector<8x256xf32>
    %37 = vector.extract_strided_slice %35 {offsets = [0, 0], sizes = [8, 64], strides = [1, 1]} : vector<8x256xf32> to vector<8x64xf32>
    %38 = vector.extract_strided_slice %35 {offsets = [0, 64], sizes = [8, 64], strides = [1, 1]} : vector<8x256xf32> to vector<8x64xf32>
    %39 = vector.extract_strided_slice %36 {offsets = [0, 128], sizes = [8, 64], strides = [1, 1]} : vector<8x256xf32> to vector<8x64xf32>
    %40 = vector.extract_strided_slice %35 {offsets = [0, 192], sizes = [8, 64], strides = [1, 1]} : vector<8x256xf32> to vector<8x64xf32>
    %41 = arith.mulf %38, %25 : vector<8x64xf32>
    %42 = arith.mulf %37, %39 : vector<8x64xf32>
    %43 = arith.addf %41, %42 : vector<8x64xf32>
    %44 = math.tanh %43 : vector<8x64xf32>
    %45 = arith.mulf %40, %44 : vector<8x64xf32>
    %46 = vector.extract_strided_slice %6 {offsets = [16, 0], sizes = [8, 256], strides = [1, 1]} : vector<72x256xf32> to vector<8x256xf32>
    %cst_13 = arith.constant dense<0.000000e+00> : vector<8x256xf32>
    %47 = tpu.matmul %45, %0, %cst_13 {dimension_numbers = #tpu.dot_dimension_numbers<[1], [0], [0], [1], [0, 0, 1, 1], [], []>} : vector<8x64xf32>, vector<64x256xf32>, vector<8x256xf32> -> vector<8x256xf32>
    %48 = arith.addf %46, %47 : vector<8x256xf32>
    %49 = arith.negf %48 : vector<8x256xf32>
    %50 = math.exp %49 : vector<8x256xf32>
    %cst_14 = arith.constant 1.000000e+00 : f32
    %51 = vector.broadcast %cst_14 : f32 to vector<8x256xf32>
    %52 = arith.addf %51, %50 : vector<8x256xf32>
    %53 = arith.divf %51, %52 : vector<8x256xf32>
    %54 = math.tanh %48 : vector<8x256xf32>
    %55 = vector.extract_strided_slice %53 {offsets = [0, 0], sizes = [8, 64], strides = [1, 1]} : vector<8x256xf32> to vector<8x64xf32>
    %56 = vector.extract_strided_slice %53 {offsets = [0, 64], sizes = [8, 64], strides = [1, 1]} : vector<8x256xf32> to vector<8x64xf32>
    %57 = vector.extract_strided_slice %54 {offsets = [0, 128], sizes = [8, 64], strides = [1, 1]} : vector<8x256xf32> to vector<8x64xf32>
    %58 = vector.extract_strided_slice %53 {offsets = [0, 192], sizes = [8, 64], strides = [1, 1]} : vector<8x256xf32> to vector<8x64xf32>
    %59 = arith.mulf %56, %43 : vector<8x64xf32>
    %60 = arith.mulf %55, %57 : vector<8x64xf32>
    %61 = arith.addf %59, %60 : vector<8x64xf32>
    %62 = math.tanh %61 : vector<8x64xf32>
    %63 = arith.mulf %58, %62 : vector<8x64xf32>
    %64 = vector.extract_strided_slice %6 {offsets = [24, 0], sizes = [8, 256], strides = [1, 1]} : vector<72x256xf32> to vector<8x256xf32>
    %cst_15 = arith.constant dense<0.000000e+00> : vector<8x256xf32>
    %65 = tpu.matmul %63, %0, %cst_15 {dimension_numbers = #tpu.dot_dimension_numbers<[1], [0], [0], [1], [0, 0, 1, 1], [], []>} : vector<8x64xf32>, vector<64x256xf32>, vector<8x256xf32> -> vector<8x256xf32>
    %66 = arith.addf %64, %65 : vector<8x256xf32>
    %67 = arith.negf %66 : vector<8x256xf32>
    %68 = math.exp %67 : vector<8x256xf32>
    %cst_16 = arith.constant 1.000000e+00 : f32
    %69 = vector.broadcast %cst_16 : f32 to vector<8x256xf32>
    %70 = arith.addf %69, %68 : vector<8x256xf32>
    %71 = arith.divf %69, %70 : vector<8x256xf32>
    %72 = math.tanh %66 : vector<8x256xf32>
    %73 = vector.extract_strided_slice %71 {offsets = [0, 0], sizes = [8, 64], strides = [1, 1]} : vector<8x256xf32> to vector<8x64xf32>
    %74 = vector.extract_strided_slice %71 {offsets = [0, 64], sizes = [8, 64], strides = [1, 1]} : vector<8x256xf32> to vector<8x64xf32>
    %75 = vector.extract_strided_slice %72 {offsets = [0, 128], sizes = [8, 64], strides = [1, 1]} : vector<8x256xf32> to vector<8x64xf32>
    %76 = vector.extract_strided_slice %71 {offsets = [0, 192], sizes = [8, 64], strides = [1, 1]} : vector<8x256xf32> to vector<8x64xf32>
    %77 = arith.mulf %74, %61 : vector<8x64xf32>
    %78 = arith.mulf %73, %75 : vector<8x64xf32>
    %79 = arith.addf %77, %78 : vector<8x64xf32>
    %80 = math.tanh %79 : vector<8x64xf32>
    %81 = arith.mulf %76, %80 : vector<8x64xf32>
    %82 = vector.extract_strided_slice %6 {offsets = [32, 0], sizes = [8, 256], strides = [1, 1]} : vector<72x256xf32> to vector<8x256xf32>
    %cst_17 = arith.constant dense<0.000000e+00> : vector<8x256xf32>
    %83 = tpu.matmul %81, %0, %cst_17 {dimension_numbers = #tpu.dot_dimension_numbers<[1], [0], [0], [1], [0, 0, 1, 1], [], []>} : vector<8x64xf32>, vector<64x256xf32>, vector<8x256xf32> -> vector<8x256xf32>
    %84 = arith.addf %82, %83 : vector<8x256xf32>
    %85 = arith.negf %84 : vector<8x256xf32>
    %86 = math.exp %85 : vector<8x256xf32>
    %cst_18 = arith.constant 1.000000e+00 : f32
    %87 = vector.broadcast %cst_18 : f32 to vector<8x256xf32>
    %88 = arith.addf %87, %86 : vector<8x256xf32>
    %89 = arith.divf %87, %88 : vector<8x256xf32>
    %90 = math.tanh %84 : vector<8x256xf32>
    %91 = vector.extract_strided_slice %89 {offsets = [0, 0], sizes = [8, 64], strides = [1, 1]} : vector<8x256xf32> to vector<8x64xf32>
    %92 = vector.extract_strided_slice %89 {offsets = [0, 64], sizes = [8, 64], strides = [1, 1]} : vector<8x256xf32> to vector<8x64xf32>
    %93 = vector.extract_strided_slice %90 {offsets = [0, 128], sizes = [8, 64], strides = [1, 1]} : vector<8x256xf32> to vector<8x64xf32>
    %94 = vector.extract_strided_slice %89 {offsets = [0, 192], sizes = [8, 64], strides = [1, 1]} : vector<8x256xf32> to vector<8x64xf32>
    %95 = arith.mulf %92, %79 : vector<8x64xf32>
    %96 = arith.mulf %91, %93 : vector<8x64xf32>
    %97 = arith.addf %95, %96 : vector<8x64xf32>
    %98 = math.tanh %97 : vector<8x64xf32>
    %99 = arith.mulf %94, %98 : vector<8x64xf32>
    %100 = vector.extract_strided_slice %6 {offsets = [40, 0], sizes = [8, 256], strides = [1, 1]} : vector<72x256xf32> to vector<8x256xf32>
    %cst_19 = arith.constant dense<0.000000e+00> : vector<8x256xf32>
    %101 = tpu.matmul %99, %0, %cst_19 {dimension_numbers = #tpu.dot_dimension_numbers<[1], [0], [0], [1], [0, 0, 1, 1], [], []>} : vector<8x64xf32>, vector<64x256xf32>, vector<8x256xf32> -> vector<8x256xf32>
    %102 = arith.addf %100, %101 : vector<8x256xf32>
    %103 = arith.negf %102 : vector<8x256xf32>
    %104 = math.exp %103 : vector<8x256xf32>
    %cst_20 = arith.constant 1.000000e+00 : f32
    %105 = vector.broadcast %cst_20 : f32 to vector<8x256xf32>
    %106 = arith.addf %105, %104 : vector<8x256xf32>
    %107 = arith.divf %105, %106 : vector<8x256xf32>
    %108 = math.tanh %102 : vector<8x256xf32>
    %109 = vector.extract_strided_slice %107 {offsets = [0, 0], sizes = [8, 64], strides = [1, 1]} : vector<8x256xf32> to vector<8x64xf32>
    %110 = vector.extract_strided_slice %107 {offsets = [0, 64], sizes = [8, 64], strides = [1, 1]} : vector<8x256xf32> to vector<8x64xf32>
    %111 = vector.extract_strided_slice %108 {offsets = [0, 128], sizes = [8, 64], strides = [1, 1]} : vector<8x256xf32> to vector<8x64xf32>
    %112 = vector.extract_strided_slice %107 {offsets = [0, 192], sizes = [8, 64], strides = [1, 1]} : vector<8x256xf32> to vector<8x64xf32>
    %113 = arith.mulf %110, %97 : vector<8x64xf32>
    %114 = arith.mulf %109, %111 : vector<8x64xf32>
    %115 = arith.addf %113, %114 : vector<8x64xf32>
    %116 = math.tanh %115 : vector<8x64xf32>
    %117 = arith.mulf %112, %116 : vector<8x64xf32>
    %118 = vector.extract_strided_slice %6 {offsets = [48, 0], sizes = [8, 256], strides = [1, 1]} : vector<72x256xf32> to vector<8x256xf32>
    %cst_21 = arith.constant dense<0.000000e+00> : vector<8x256xf32>
    %119 = tpu.matmul %117, %0, %cst_21 {dimension_numbers = #tpu.dot_dimension_numbers<[1], [0], [0], [1], [0, 0, 1, 1], [], []>} : vector<8x64xf32>, vector<64x256xf32>, vector<8x256xf32> -> vector<8x256xf32>
    %120 = arith.addf %118, %119 : vector<8x256xf32>
    %121 = arith.negf %120 : vector<8x256xf32>
    %122 = math.exp %121 : vector<8x256xf32>
    %cst_22 = arith.constant 1.000000e+00 : f32
    %123 = vector.broadcast %cst_22 : f32 to vector<8x256xf32>
    %124 = arith.addf %123, %122 : vector<8x256xf32>
    %125 = arith.divf %123, %124 : vector<8x256xf32>
    %126 = math.tanh %120 : vector<8x256xf32>
    %127 = vector.extract_strided_slice %125 {offsets = [0, 0], sizes = [8, 64], strides = [1, 1]} : vector<8x256xf32> to vector<8x64xf32>
    %128 = vector.extract_strided_slice %125 {offsets = [0, 64], sizes = [8, 64], strides = [1, 1]} : vector<8x256xf32> to vector<8x64xf32>
    %129 = vector.extract_strided_slice %126 {offsets = [0, 128], sizes = [8, 64], strides = [1, 1]} : vector<8x256xf32> to vector<8x64xf32>
    %130 = vector.extract_strided_slice %125 {offsets = [0, 192], sizes = [8, 64], strides = [1, 1]} : vector<8x256xf32> to vector<8x64xf32>
    %131 = arith.mulf %128, %115 : vector<8x64xf32>
    %132 = arith.mulf %127, %129 : vector<8x64xf32>
    %133 = arith.addf %131, %132 : vector<8x64xf32>
    %134 = math.tanh %133 : vector<8x64xf32>
    %135 = arith.mulf %130, %134 : vector<8x64xf32>
    %136 = vector.extract_strided_slice %6 {offsets = [56, 0], sizes = [8, 256], strides = [1, 1]} : vector<72x256xf32> to vector<8x256xf32>
    %cst_23 = arith.constant dense<0.000000e+00> : vector<8x256xf32>
    %137 = tpu.matmul %135, %0, %cst_23 {dimension_numbers = #tpu.dot_dimension_numbers<[1], [0], [0], [1], [0, 0, 1, 1], [], []>} : vector<8x64xf32>, vector<64x256xf32>, vector<8x256xf32> -> vector<8x256xf32>
    %138 = arith.addf %136, %137 : vector<8x256xf32>
    %139 = arith.negf %138 : vector<8x256xf32>
    %140 = math.exp %139 : vector<8x256xf32>
    %cst_24 = arith.constant 1.000000e+00 : f32
    %141 = vector.broadcast %cst_24 : f32 to vector<8x256xf32>
    %142 = arith.addf %141, %140 : vector<8x256xf32>
    %143 = arith.divf %141, %142 : vector<8x256xf32>
    %144 = math.tanh %138 : vector<8x256xf32>
    %145 = vector.extract_strided_slice %143 {offsets = [0, 0], sizes = [8, 64], strides = [1, 1]} : vector<8x256xf32> to vector<8x64xf32>
    %146 = vector.extract_strided_slice %143 {offsets = [0, 64], sizes = [8, 64], strides = [1, 1]} : vector<8x256xf32> to vector<8x64xf32>
    %147 = vector.extract_strided_slice %144 {offsets = [0, 128], sizes = [8, 64], strides = [1, 1]} : vector<8x256xf32> to vector<8x64xf32>
    %148 = vector.extract_strided_slice %143 {offsets = [0, 192], sizes = [8, 64], strides = [1, 1]} : vector<8x256xf32> to vector<8x64xf32>
    %149 = arith.mulf %146, %133 : vector<8x64xf32>
    %150 = arith.mulf %145, %147 : vector<8x64xf32>
    %151 = arith.addf %149, %150 : vector<8x64xf32>
    %152 = math.tanh %151 : vector<8x64xf32>
    %153 = arith.mulf %148, %152 : vector<8x64xf32>
    %154 = vector.extract_strided_slice %153 {offsets = [0, 32], sizes = [8, 32], strides = [1, 1]} : vector<8x64xf32> to vector<8x32xf32>
    %155 = vector.extract_strided_slice %6 {offsets = [64, 0], sizes = [8, 256], strides = [1, 1]} : vector<72x256xf32> to vector<8x256xf32>
    %cst_25 = arith.constant dense<0.000000e+00> : vector<8x256xf32>
    %156 = tpu.matmul %153, %0, %cst_25 {dimension_numbers = #tpu.dot_dimension_numbers<[1], [0], [0], [1], [0, 0, 1, 1], [], []>} : vector<8x64xf32>, vector<64x256xf32>, vector<8x256xf32> -> vector<8x256xf32>
    %157 = arith.addf %155, %156 : vector<8x256xf32>
    %158 = arith.negf %157 : vector<8x256xf32>
    %159 = math.exp %158 : vector<8x256xf32>
    %cst_26 = arith.constant 1.000000e+00 : f32
    %160 = vector.broadcast %cst_26 : f32 to vector<8x256xf32>
    %161 = arith.addf %160, %159 : vector<8x256xf32>
    %162 = arith.divf %160, %161 : vector<8x256xf32>
    %163 = math.tanh %157 : vector<8x256xf32>
    %164 = vector.extract_strided_slice %162 {offsets = [0, 0], sizes = [8, 64], strides = [1, 1]} : vector<8x256xf32> to vector<8x64xf32>
    %165 = vector.extract_strided_slice %162 {offsets = [0, 64], sizes = [8, 64], strides = [1, 1]} : vector<8x256xf32> to vector<8x64xf32>
    %166 = vector.extract_strided_slice %163 {offsets = [0, 128], sizes = [8, 64], strides = [1, 1]} : vector<8x256xf32> to vector<8x64xf32>
    %167 = vector.extract_strided_slice %162 {offsets = [0, 192], sizes = [8, 64], strides = [1, 1]} : vector<8x256xf32> to vector<8x64xf32>
    %168 = arith.mulf %165, %151 : vector<8x64xf32>
    %169 = arith.mulf %164, %166 : vector<8x64xf32>
    %170 = arith.addf %168, %169 : vector<8x64xf32>
    %171 = math.tanh %170 : vector<8x64xf32>
    %172 = arith.mulf %167, %171 : vector<8x64xf32>
    %173 = vector.extract_strided_slice %172 {offsets = [0, 32], sizes = [8, 32], strides = [1, 1]} : vector<8x64xf32> to vector<8x32xf32>
    %174 = tpu.concatenate %154, %173 in 1 : vector<8x32xf32>, vector<8x32xf32> -> vector<8x64xf32>
    %175 = math.tanh %174 : vector<8x64xf32>
    %c0_27 = arith.constant 0 : index
    %c0_28 = arith.constant 0 : index
    %176 = vector.load %arg4[%c0_27, %c0_28] : memref<64x32xf32, #tpu.memory_space<vmem>>, vector<64x32xf32>
    %cst_29 = arith.constant dense<0.000000e+00> : vector<8x32xf32>
    %177 = tpu.matmul %175, %176, %cst_29 {dimension_numbers = #tpu.dot_dimension_numbers<[1], [0], [0], [1], [0, 0, 1, 1], [], []>} : vector<8x64xf32>, vector<64x32xf32>, vector<8x32xf32> -> vector<8x32xf32>
    %c0_30 = arith.constant 0 : index
    %c0_31 = arith.constant 0 : index
    %178 = vector.load %arg5[%c0_30, %c0_31] : memref<1x32xf32, #tpu.memory_space<vmem>>, vector<1x32xf32>
    %179 = vector.broadcast %178 : vector<1x32xf32> to vector<8x32xf32>
    %180 = arith.addf %177, %179 : vector<8x32xf32>
    %181 = math.tanh %180 : vector<8x32xf32>
    %c0_32 = arith.constant 0 : index
    %c0_33 = arith.constant 0 : index
    %182 = vector.load %arg6[%c0_32, %c0_33] : memref<32x4xf32, #tpu.memory_space<vmem>>, vector<32x4xf32>
    %cst_34 = arith.constant dense<0.000000e+00> : vector<8x4xf32>
    %183 = tpu.matmul %181, %182, %cst_34 {dimension_numbers = #tpu.dot_dimension_numbers<[1], [0], [0], [1], [0, 0, 1, 1], [], []>} : vector<8x32xf32>, vector<32x4xf32>, vector<8x4xf32> -> vector<8x4xf32>
    %c0_35 = arith.constant 0 : index
    %c0_36 = arith.constant 0 : index
    %184 = vector.load %arg7[%c0_35, %c0_36] : memref<1x4xf32, #tpu.memory_space<vmem>>, vector<1x4xf32>
    %185 = vector.broadcast %184 : vector<1x4xf32> to vector<8x4xf32>
    %186 = arith.addf %183, %185 : vector<8x4xf32>
    %c0_37 = arith.constant 0 : index
    %c0_38 = arith.constant 0 : index
    %187 = vector.load %arg8[%c0_37, %c0_38] : memref<8x4xf32, #tpu.memory_space<vmem>>, vector<8x4xf32>
    tpu.vector_store %arg8[%c0_37, %c0_38], %186 {strides = array<i32>} : memref<8x4xf32, #tpu.memory_space<vmem>>, vector<8x4xf32>,
    return
  }
}

</mosaic_0001>

<llo_original>
// kernel: tpu_custom_call.1
$region0: #{tpu_custom_call.1}
  #allocation0 [shape = 'u32[]', space=smem, size = 0x4, offset = 0x4, fixed_abs, tag = 'smem constant byte address 0x4 - core index']
  #allocation1 [shape = 'u32[144,128]{1,0:T(1,128)}', space=vmem, size = 0x12000, scoped, tag = 'internal scratch']
  %s0 = inlined_call_operand.vmem [shape: f32[72,16], index: 0, kind: input, shape index: {}]
  %s1 = inlined_call_operand.vmem [shape: f32[16,256], index: 1, kind: input, shape index: {}]
  %s2 = inlined_call_operand.vmem [shape: f32[1,256], index: 2, kind: input, shape index: {}]
  %s3 = inlined_call_operand.vmem [shape: f32[64,256], index: 3, kind: input, shape index: {}]
  %s4 = inlined_call_operand.vmem [shape: f32[64,32], index: 4, kind: input, shape index: {}]
  %s5 = inlined_call_operand.vmem [shape: f32[1,32], index: 5, kind: input, shape index: {}]
  %s6 = inlined_call_operand.vmem [shape: f32[32,4], index: 6, kind: input, shape index: {}]
  %s7 = inlined_call_operand.vmem [shape: f32[1,4], index: 7, kind: input, shape index: {}]
  %s8 = inlined_call_operand.vmem [shape: f32[8,4], index: 8, kind: output, shape index: {}]
  %s9 = sld [smem:[#allocation0]]
  $region42: #{tpu_custom_call.1} parent=0
    _
  %s11 = ssub.s32 1, %s9
  %s12 = scalar_select 0, %s11, %s9
  // Predicated region
  $region2: #{tpu_custom_call.1} parent=0 // pred_check
    _
  $region3: #{tpu_custom_call.1} parent=0 // pred_check_branch
    %14 = sbr.rel (0) target = $region5
  $region4: #{tpu_custom_call.1} parent=0 // pred_region
    _
  $region5: #{tpu_custom_call.1} parent=0 // pred_fallthru
    _
  // Predicated region
  $region6: #{tpu_custom_call.1} parent=0 // pred_check
    _
  $region7: #{tpu_custom_call.1} parent=0 // pred_check_branch
    %16 = sbr.rel (0) target = $region9
  $region8: #{tpu_custom_call.1} parent=0 // pred_region
    _
  $region9: #{tpu_custom_call.1} parent=0 // pred_fallthru
    _
  // Predicated region
  $region10: #{tpu_custom_call.1} parent=0 // pred_check
    _
  $region11: #{tpu_custom_call.1} parent=0 // pred_check_branch
    %18 = sbr.rel (0) target = $region13
  $region12: #{tpu_custom_call.1} parent=0 // pred_region
    _
  $region13: #{tpu_custom_call.1} parent=0 // pred_fallthru
    _
  // Predicated region
  $region14: #{tpu_custom_call.1} parent=0 // pred_check
    _
  $region15: #{tpu_custom_call.1} parent=0 // pred_check_branch
    %20 = sbr.rel (0) target = $region17
  $region16: #{tpu_custom_call.1} parent=0 // pred_region
    _
  $region17: #{tpu_custom_call.1} parent=0 // pred_fallthru
    _
  // Predicated region
  $region18: #{tpu_custom_call.1} parent=0 // pred_check
    _
  $region19: #{tpu_custom_call.1} parent=0 // pred_check_branch
    %22 = sbr.rel (0) target = $region21
  $region20: #{tpu_custom_call.1} parent=0 // pred_region
    _
  $region21: #{tpu_custom_call.1} parent=0 // pred_fallthru
    _
  // Predicated region
  $region22: #{tpu_custom_call.1} parent=0 // pred_check
    _
  $region23: #{tpu_custom_call.1} parent=0 // pred_check_branch
    %24 = sbr.rel (0) target = $region25
  $region24: #{tpu_custom_call.1} parent=0 // pred_region
    _
  $region25: #{tpu_custom_call.1} parent=0 // pred_fallthru
    _
  // Predicated region
  $region26: #{tpu_custom_call.1} parent=0 // pred_check
    _
  $region27: #{tpu_custom_call.1} parent=0 // pred_check_branch
    %26 = sbr.rel (0) target = $region29
  $region28: #{tpu_custom_call.1} parent=0 // pred_region
    _
  $region29: #{tpu_custom_call.1} parent=0 // pred_fallthru
    _
  // Predicated region
  $region30: #{tpu_custom_call.1} parent=0 // pred_check
    _
  $region31: #{tpu_custom_call.1} parent=0 // pred_check_branch
    %28 = sbr.rel (0) target = $region33
  $region32: #{tpu_custom_call.1} parent=0 // pred_region
    _
  $region33: #{tpu_custom_call.1} parent=0 // pred_fallthru
    _
  %v29 = vld [vmem:[%s3] sm:$0xff]
  %v30 = vld [vmem:[%s3 + $0x8] sm:$0xff]
  %v31 = vld [vmem:[%s3 + $0x10] sm:$0xff]
  %v32 = vld [vmem:[%s3 + $0x18] sm:$0xff]
  %v33 = vld [vmem:[%s3 + $0x20] sm:$0xff]
  %v34 = vld [vmem:[%s3 + $0x28] sm:$0xff]
  %v35 = vld [vmem:[%s3 + $0x30] sm:$0xff]
  %v36 = vld [vmem:[%s3 + $0x38] sm:$0xff]
  %v37 = vld [vmem:[%s3 + $0x40] sm:$0xff]
  %v38 = vld [vmem:[%s3 + $0x48] sm:$0xff]
  %v39 = vld [vmem:[%s3 + $0x50] sm:$0xff]
  %v40 = vld [vmem:[%s3 + $0x58] sm:$0xff]
  %v41 = vld [vmem:[%s3 + $0x60] sm:$0xff]
  %v42 = vld [vmem:[%s3 + $0x68] sm:$0xff]
  %v43 = vld [vmem:[%s3 + $0x70] sm:$0xff]
  %v44 = vld [vmem:[%s3 + $0x78] sm:$0xff]
  %v45 = vld [vmem:[%s0] sm:$0xff]
  %v46 = vld [vmem:[%s0 + $0x8] sm:$0xff]
  %v47 = vld [vmem:[%s0 + $0x10] sm:$0xff]
  %v48 = vld [vmem:[%s0 + $0x18] sm:$0xff]
  %v49 = vld [vmem:[%s0 + $0x20] sm:$0xff]
  %v50 = vld [vmem:[%s0 + $0x28] sm:$0xff]
  %v51 = vld [vmem:[%s0 + $0x30] sm:$0xff]
  %v52 = vld [vmem:[%s0 + $0x38] sm:$0xff]
  %v53 = vld [vmem:[%s0 + $0x40] sm:$0xff]
  %v54 = vld [vmem:[%s1] sm:$0xff]
  %v55 = vld [vmem:[%s1 + $0x8] sm:$0xff]
  %v56 = vld [vmem:[%s1 + $0x10] sm:$0xff]
  %v57 = vld [vmem:[%s1 + $0x18] sm:$0xff]
  %v58 = vld [vmem:[%s2] sm:$0x3]
  %v60 = vlaneseq
  %v61 = vshrl.u32 %v60, 7
  %v62 = vsub.s32 0, %v61
  %v63 = vrot.slane %v58, %v62
  %v64 = vlaneseq
  %v65 = vshrl.u32 %v64, 7
  %v66 = vsub.s32 1, %v65
  %v67 = vrot.slane %v58, %v66
  %vm70 = vcmask 130048
  %v72 = vsel %vm70, %v45, 0
  %v75 = vsel %vm70, %v46, 0
  %v78 = vsel %vm70, %v47, 0
  %v81 = vsel %vm70, %v48, 0
  %v84 = vsel %vm70, %v49, 0
  %v87 = vsel %vm70, %v50, 0
  %v90 = vsel %vm70, %v51, 0
  %v93 = vsel %vm70, %v52, 0
  %v96 = vsel %vm70, %v53, 0
  %98 = vmatprep.subr.mxu0 %v55
  %99 = vmatpush1.msra.mxu0 %v54
  %100 = vmatprep.subr.mxu0 %v57
  %101 = vmatpush1.msra.mxu0 %v56
  %102 = vmatprep.subr.mxu0 0.0
  %103 = vmatpush1.msra.mxu0 0.0
  %104 = vmatprep.subr.mxu0 0.0
  %105 = vmatpush1.msra.mxu0 0.0
  %106 = vmatprep.subr.mxu0 0.0
  %107 = vmatpush1.msra.mxu0 0.0
  %108 = vmatprep.subr.mxu0 0.0
  %109 = vmatpush1.msra.mxu0 0.0
  %110 = vmatprep.subr.mxu0 0.0
  %111 = vmatpush1.msra.mxu0 0.0
  %112 = vmatprep.subr.mxu0 0.0
  %113 = vmatpush1.msra.mxu0 0.0
  %114 = vmatprep.subr.mxu0 0.0
  %115 = vmatpush1.msra.mxu0 0.0
  %116 = vmatprep.subr.mxu0 0.0
  %117 = vmatpush1.msra.mxu0 0.0
  %118 = vmatprep.subr.mxu0 0.0
  %119 = vmatpush1.msra.mxu0 0.0
  %120 = vmatprep.subr.mxu0 0.0
  %121 = vmatpush1.msra.mxu0 0.0
  %122 = vmatprep.subr.mxu0 0.0
  %123 = vmatpush1.msra.mxu0 0.0
  %124 = vmatprep.subr.mxu0 0.0
  %125 = vmatpush1.msra.mxu0 0.0
  %126 = vmatprep.subr.mxu0 0.0
  %127 = vmatpush1.msra.mxu0 0.0
  %128 = vmatprep.subr.mxu0 0.0
  %129 = vmatpush1.msra.mxu0 0.0
  %130 = vmatprep.subr.mxu0 0.0
  %131 = vmatpush1.msra.mxu0 0.0
  %132 = vmatprep.subr.mxu0 0.0
  %133 = vmatpush1.msra.mxu0 0.0
  %134 = vmatprep.subr.mxu0 0.0
  %135 = vmatpush1.msra.mxu0 0.0
  %136 = vmatprep.subr.mxu0 0.0
  %137 = vmatpush1.msra.mxu0 0.0
  %138 = vmatprep.subr.mxu0 0.0
  %139 = vmatpush1.msra.mxu0 0.0
  %140 = vmatprep.subr.mxu0 0.0
  %141 = vmatpush1.msra.mxu0 0.0
  %142 = vmatprep.subr.mxu0 0.0
  %143 = vmatpush1.msra.mxu0 0.0
  %144 = vmatprep.subr.mxu0 0.0
  %145 = vmatpush1.msra.mxu0 0.0
  %146 = vmatprep.subr.mxu0 0.0
  %147 = vmatpush1.msra.mxu0 0.0
  %148 = vmatprep.subr.mxu0 0.0
  %149 = vmatpush1.msra.mxu0 0.0
  %150 = vmatprep.subr.mxu0 0.0
  %151 = vmatpush1.msra.mxu0 0.0
  %152 = vmatprep.subr.mxu0 0.0
  %153 = vmatpush1.msra.mxu0 0.0
  %154 = vmatprep.subr.mxu0 0.0
  %155 = vmatpush1.msra.mxu0 0.0
  %156 = vmatprep.subr.mxu0 0.0
  %157 = vmatpush1.msra.mxu0 0.0
  %158 = vmatprep.subr.mxu0 0.0
  %159 = vmatpush1.msra.mxu0 0.0
  %160 = vmatprep.subr.mxu0 0.0
  %161 = vmatpush1.msra.mxu0 0.0
  %162 = vmatprep.mubr.f32.mxu0 0.0
  %163 = vmatmul.mubr.f32.gmra.mrb[0].mxu0 %v72
  %v164 = vpop.f32.mrb[0].mxu0
  %v165 = vadd.f32 %v63, %v164
  %v166 = vpop.f32.mrb[0].mxu0
  %v167 = vadd.f32 %v67, %v166
  %168 = vmatprep.mubr.f32.mxu0 0.0
  %169 = vmatmul.mubr.f32.gmra.mrb[0].mxu0 %v75
  %v170 = vpop.f32.mrb[0].mxu0
  %v171 = vadd.f32 %v63, %v170
  %v172 = vpop.f32.mrb[0].mxu0
  %v173 = vadd.f32 %v67, %v172
  %174 = vmatprep.mubr.f32.mxu0 0.0
  %175 = vmatmul.mubr.f32.gmra.mrb[0].mxu0 %v78
  %v176 = vpop.f32.mrb[0].mxu0
  %v177 = vadd.f32 %v63, %v176
  %v178 = vpop.f32.mrb[0].mxu0
  %v179 = vadd.f32 %v67, %v178
  %180 = vmatprep.mubr.f32.mxu0 0.0
  %181 = vmatmul.mubr.f32.gmra.mrb[0].mxu0 %v81
  %v182 = vpop.f32.mrb[0].mxu0
  %v183 = vadd.f32 %v63, %v182
  %v184 = vpop.f32.mrb[0].mxu0
  %v185 = vadd.f32 %v67, %v184
  %186 = vmatprep.mubr.f32.mxu0 0.0
  %187 = vmatmul.mubr.f32.gmra.mrb[0].mxu0 %v84
  %v188 = vpop.f32.mrb[0].mxu0
  %v189 = vadd.f32 %v63, %v188
  %v190 = vpop.f32.mrb[0].mxu0
  %v191 = vadd.f32 %v67, %v190
  %192 = vmatprep.mubr.f32.mxu0 0.0
  %193 = vmatmul.mubr.f32.gmra.mrb[0].mxu0 %v87
  %v194 = vpop.f32.mrb[0].mxu0
  %v195 = vadd.f32 %v63, %v194
  %v196 = vpop.f32.mrb[0].mxu0
  %v197 = vadd.f32 %v67, %v196
  %198 = vmatprep.mubr.f32.mxu0 0.0
  %199 = vmatmul.mubr.f32.gmra.mrb[0].mxu0 %v90
  %v200 = vpop.f32.mrb[0].mxu0
  %v201 = vadd.f32 %v63, %v200
  %v202 = vpop.f32.mrb[0].mxu0
  %v203 = vadd.f32 %v67, %v202
  %204 = vmatprep.mubr.f32.mxu0 0.0
  %205 = vmatmul.mubr.f32.gmra.mrb[0].mxu0 %v93
  %v206 = vpop.f32.mrb[0].mxu0
  %v207 = vadd.f32 %v63, %v206
  %v208 = vpop.f32.mrb[0].mxu0
  %v209 = vadd.f32 %v67, %v208
  %210 = vmatprep.mubr.f32.mxu0 0.0
  %211 = vmatmul.mubr.f32.gmra.mrb[0].mxu0 %v96
  %v212 = vpop.f32.mrb[0].mxu0
  %v213 = vadd.f32 %v63, %v212
  %v214 = vpop.f32.mrb[0].mxu0
  %v215 = vadd.f32 %v67, %v214
  %216 = vdwg.mxu0
  %v217 = vxor.u32 %v165, 2147483648
  %v218 = vxor.u32 %v167, 2147483648
  %v219 = vmul.f32 %v217, 1.442695
  %v220 = vpow.pop %v219
  %v221 = vmul.f32 %v218, 1.442695
  %v222 = vpow.pop %v221
  %v223 = vadd.f32 %v220, 1.0
  %v224 = vadd.f32 %v222, 1.0
  %v225 = vrcp.pop %v223
  %v226 = vmul.f32 1.0, %v225
  %v227 = vrcp.pop %v224
  %v228 = vmul.f32 1.0, %v227
  %v229 = vtanh.pop %v167
  %v230 = vmul.f32 %v226, 0.0
  %v231 = vmul.f32 %v226, %v229
  %233 = vrot.lane.b32.xlu0 %v231, 64
  %v234 = vpop.permute.xlu0 %233
  %v236 = vadd.f32 %v230, %v234
  %vm237 = vcmask 261120
  %v238 = vsel %vm237, 1.0, 0.0
  %240 = vrot.lane.b32.xlu0 %v238, 64
  %v241 = vpop.permute.xlu0 %240
  %v243 = vmul.f32 %v236, %v241
  %v244 = vtanh.pop %v243
  %v245 = vmul.f32 %v228, %v244
  %247 = vrot.lane.b32.xlu0 %v245, 64
  %v248 = vpop.permute.xlu0 %247
  %vm249 = vcmask 523264
  %v250 = vsel %vm249, %v248, 0
  %252 = vmatprep.subr.mxu0 %v30
  %253 = vmatpush1.msra.mxu0 %v29
  %254 = vmatprep.subr.mxu0 %v32
  %255 = vmatpush1.msra.mxu0 %v31
  %256 = vmatprep.subr.mxu0 %v34
  %257 = vmatpush1.msra.mxu0 %v33
  %258 = vmatprep.subr.mxu0 %v36
  %259 = vmatpush1.msra.mxu0 %v35
  %260 = vmatprep.subr.mxu0 %v38
  %261 = vmatpush1.msra.mxu0 %v37
  %262 = vmatprep.subr.mxu0 %v40
  %263 = vmatpush1.msra.mxu0 %v39
  %264 = vmatprep.subr.mxu0 %v42
  %265 = vmatpush1.msra.mxu0 %v41
  %266 = vmatprep.subr.mxu0 %v44
  %267 = vmatpush1.msra.mxu0 %v43
  %268 = vmatprep.subr.mxu0 0.0
  %269 = vmatpush1.msra.mxu0 0.0
  %270 = vmatprep.subr.mxu0 0.0
  %271 = vmatpush1.msra.mxu0 0.0
  %272 = vmatprep.subr.mxu0 0.0
  %273 = vmatpush1.msra.mxu0 0.0
  %274 = vmatprep.subr.mxu0 0.0
  %275 = vmatpush1.msra.mxu0 0.0
  %276 = vmatprep.subr.mxu0 0.0
  %277 = vmatpush1.msra.mxu0 0.0
  %278 = vmatprep.subr.mxu0 0.0
  %279 = vmatpush1.msra.mxu0 0.0
  %280 = vmatprep.subr.mxu0 0.0
  %281 = vmatpush1.msra.mxu0 0.0
  %282 = vmatprep.subr.mxu0 0.0
  %283 = vmatpush1.msra.mxu0 0.0
  %284 = vmatprep.subr.mxu0 0.0
  %285 = vmatpush1.msra.mxu0 0.0
  %286 = vmatprep.subr.mxu0 0.0
  %287 = vmatpush1.msra.mxu0 0.0
  %288 = vmatprep.subr.mxu0 0.0
  %289 = vmatpush1.msra.mxu0 0.0
  %290 = vmatprep.subr.mxu0 0.0
  %291 = vmatpush1.msra.mxu0 0.0
  %292 = vmatprep.subr.mxu0 0.0
  %293 = vmatpush1.msra.mxu0 0.0
  %294 = vmatprep.subr.mxu0 0.0
  %295 = vmatpush1.msra.mxu0 0.0
  %296 = vmatprep.subr.mxu0 0.0
  %297 = vmatpush1.msra.mxu0 0.0
  %298 = vmatprep.subr.mxu0 0.0
  %299 = vmatpush1.msra.mxu0 0.0
  %300 = vmatprep.subr.mxu0 0.0
  %301 = vmatpush1.msra.mxu0 0.0
  %302 = vmatprep.subr.mxu0 0.0
  %303 = vmatpush1.msra.mxu0 0.0
  %304 = vmatprep.subr.mxu0 0.0
  %305 = vmatpush1.msra.mxu0 0.0
  %306 = vmatprep.subr.mxu0 0.0
  %307 = vmatpush1.msra.mxu0 0.0
  %308 = vmatprep.subr.mxu0 0.0
  %309 = vmatpush1.msra.mxu0 0.0
  %310 = vmatprep.subr.mxu0 0.0
  %311 = vmatpush1.msra.mxu0 0.0
  %312 = vmatprep.subr.mxu0 0.0
  %313 = vmatpush1.msra.mxu0 0.0
  %314 = vmatprep.subr.mxu0 0.0
  %315 = vmatpush1.msra.mxu0 0.0
  %316 = vmatprep.mubr.f32.mxu0 0.0
  %317 = vmatmul.mubr.f32.gmra.mrb[0].mxu0 %v250
  %v318 = vpop.f32.mrb[0].mxu0
  %v319 = vadd.f32 0.0, %v318
  %v320 = vpop.f32.mrb[0].mxu0
  %v321 = vadd.f32 0.0, %v320
  %322 = vdwg.mxu0
  %v323 = vadd.f32 %v171, %v319
  %v324 = vadd.f32 %v173, %v321
  %v325 = vxor.u32 %v323, 2147483648
  %v326 = vxor.u32 %v324, 2147483648
  %v327 = vmul.f32 %v325, 1.442695
  %v328 = vpow.pop %v327
  %v329 = vmul.f32 %v326, 1.442695
  %v330 = vpow.pop %v329
  %v331 = vadd.f32 %v328, 1.0
  %v332 = vadd.f32 %v330, 1.0
  %v333 = vrcp.pop %v331
  %v334 = vmul.f32 1.0, %v333
  %v335 = vrcp.pop %v332
  %v336 = vmul.f32 1.0, %v335
  %v337 = vtanh.pop %v324
  %v338 = vmul.f32 %v334, %v243
  %v339 = vmul.f32 %v334, %v337
  %341 = vrot.lane.b32.xlu0 %v339, 64
  %v342 = vpop.permute.xlu0 %341
  %v344 = vadd.f32 %v338, %v342
  %v345 = vtanh.pop %v344
  %v346 = vmul.f32 %v336, %v345
  %348 = vrot.lane.b32.xlu0 %v346, 64
  %v349 = vpop.permute.xlu0 %348
  %v350 = vsel %vm249, %v349, 0
  %352 = vmatprep.subr.mxu0 %v30
  %353 = vmatpush1.msra.mxu0 %v29
  %354 = vmatprep.subr.mxu0 %v32
  %355 = vmatpush1.msra.mxu0 %v31
  %356 = vmatprep.subr.mxu0 %v34
  %357 = vmatpush1.msra.mxu0 %v33
  %358 = vmatprep.subr.mxu0 %v36
  %359 = vmatpush1.msra.mxu0 %v35
  %360 = vmatprep.subr.mxu0 %v38
  %361 = vmatpush1.msra.mxu0 %v37
  %362 = vmatprep.subr.mxu0 %v40
  %363 = vmatpush1.msra.mxu0 %v39
  %364 = vmatprep.subr.mxu0 %v42
  %365 = vmatpush1.msra.mxu0 %v41
  %366 = vmatprep.subr.mxu0 %v44
  %367 = vmatpush1.msra.mxu0 %v43
  %368 = vmatprep.subr.mxu0 0.0
  %369 = vmatpush1.msra.mxu0 0.0
  %370 = vmatprep.subr.mxu0 0.0
  %371 = vmatpush1.msra.mxu0 0.0
  %372 = vmatprep.subr.mxu0 0.0
  %373 = vmatpush1.msra.mxu0 0.0
  %374 = vmatprep.subr.mxu0 0.0
  %375 = vmatpush1.msra.mxu0 0.0
  %376 = vmatprep.subr.mxu0 0.0
  %377 = vmatpush1.msra.mxu0 0.0
  %378 = vmatprep.subr.mxu0 0.0
  %379 = vmatpush1.msra.mxu0 0.0
  %380 = vmatprep.subr.mxu0 0.0
  %381 = vmatpush1.msra.mxu0 0.0
  %382 = vmatprep.subr.mxu0 0.0
  %383 = vmatpush1.msra.mxu0 0.0
  %384 = vmatprep.subr.mxu0 0.0
  %385 = vmatpush1.msra.mxu0 0.0
  %386 = vmatprep.subr.mxu0 0.0
  %387 = vmatpush1.msra.mxu0 0.0
  %388 = vmatprep.subr.mxu0 0.0
  %389 = vmatpush1.msra.mxu0 0.0
  %390 = vmatprep.subr.mxu0 0.0
  %391 = vmatpush1.msra.mxu0 0.0
  %392 = vmatprep.subr.mxu0 0.0
  %393 = vmatpush1.msra.mxu0 0.0
  %394 = vmatprep.subr.mxu0 0.0
  %395 = vmatpush1.msra.mxu0 0.0
  %396 = vmatprep.subr.mxu0 0.0
  %397 = vmatpush1.msra.mxu0 0.0
  %398 = vmatprep.subr.mxu0 0.0
  %399 = vmatpush1.msra.mxu0 0.0
  %400 = vmatprep.subr.mxu0 0.0
  %401 = vmatpush1.msra.mxu0 0.0
  %402 = vmatprep.subr.mxu0 0.0
  %403 = vmatpush1.msra.mxu0 0.0
  %404 = vmatprep.subr.mxu0 0.0
  %405 = vmatpush1.msra.mxu0 0.0
  %406 = vmatprep.subr.mxu0 0.0
  %407 = vmatpush1.msra.mxu0 0.0
  %408 = vmatprep.subr.mxu0 0.0
  %409 = vmatpush1.msra.mxu0 0.0
  %410 = vmatprep.subr.mxu0 0.0
  %411 = vmatpush1.msra.mxu0 0.0
  %412 = vmatprep.subr.mxu0 0.0
  %413 = vmatpush1.msra.mxu0 0.0
  %414 = vmatprep.subr.mxu0 0.0
  %415 = vmatpush1.msra.mxu0 0.0
  %416 = vmatprep.mubr.f32.mxu0 0.0
  %417 = vmatmul.mubr.f32.gmra.mrb[0].mxu0 %v350
  %v418 = vpop.f32.mrb[0].mxu0
  %v419 = vadd.f32 0.0, %v418
  %v420 = vpop.f32.mrb[0].mxu0
  %v421 = vadd.f32 0.0, %v420
  %422 = vdwg.mxu0
  %v423 = vadd.f32 %v177, %v419
  %v424 = vadd.f32 %v179, %v421
  %v425 = vxor.u32 %v423, 2147483648
  %v426 = vxor.u32 %v424, 2147483648
  %v427 = vmul.f32 %v425, 1.442695
  %v428 = vpow.pop %v427
  %v429 = vmul.f32 %v426, 1.442695
  %v430 = vpow.pop %v429
  %v431 = vadd.f32 %v428, 1.0
  %v432 = vadd.f32 %v430, 1.0
  %v433 = vrcp.pop %v431
  %v434 = vmul.f32 1.0, %v433
  %v435 = vrcp.pop %v432
  %v436 = vmul.f32 1.0, %v435
  %v437 = vtanh.pop %v424
  %v438 = vmul.f32 %v434, %v344
  %v439 = vmul.f32 %v434, %v437
  %441 = vrot.lane.b32.xlu0 %v439, 64
  %v442 = vpop.permute.xlu0 %441
  %v444 = vadd.f32 %v438, %v442
  %v445 = vtanh.pop %v444
  %v446 = vmul.f32 %v436, %v445
  %448 = vrot.lane.b32.xlu0 %v446, 64
  %v449 = vpop.permute.xlu0 %448
  %v450 = vsel %vm249, %v449, 0
  %452 = vmatprep.subr.mxu0 %v30
  %453 = vmatpush1.msra.mxu0 %v29
  %454 = vmatprep.subr.mxu0 %v32
  %455 = vmatpush1.msra.mxu0 %v31
  %456 = vmatprep.subr.mxu0 %v34
  %457 = vmatpush1.msra.mxu0 %v33
  %458 = vmatprep.subr.mxu0 %v36
  %459 = vmatpush1.msra.mxu0 %v35
  %460 = vmatprep.subr.mxu0 %v38
  %461 = vmatpush1.msra.mxu0 %v37
  %462 = vmatprep.subr.mxu0 %v40
  %463 = vmatpush1.msra.mxu0 %v39
  %464 = vmatprep.subr.mxu0 %v42
  %465 = vmatpush1.msra.mxu0 %v41
  %466 = vmatprep.subr.mxu0 %v44
  %467 = vmatpush1.msra.mxu0 %v43
  %468 = vmatprep.subr.mxu0 0.0
  %469 = vmatpush1.msra.mxu0 0.0
  %470 = vmatprep.subr.mxu0 0.0
  %471 = vmatpush1.msra.mxu0 0.0
  %472 = vmatprep.subr.mxu0 0.0
  %473 = vmatpush1.msra.mxu0 0.0
  %474 = vmatprep.subr.mxu0 0.0
  %475 = vmatpush1.msra.mxu0 0.0
  %476 = vmatprep.subr.mxu0 0.0
  %477 = vmatpush1.msra.mxu0 0.0
  %478 = vmatprep.subr.mxu0 0.0
  %479 = vmatpush1.msra.mxu0 0.0
  %480 = vmatprep.subr.mxu0 0.0
  %481 = vmatpush1.msra.mxu0 0.0
  %482 = vmatprep.subr.mxu0 0.0
  %483 = vmatpush1.msra.mxu0 0.0
  %484 = vmatprep.subr.mxu0 0.0
  %485 = vmatpush1.msra.mxu0 0.0
  %486 = vmatprep.subr.mxu0 0.0
  %487 = vmatpush1.msra.mxu0 0.0
  %488 = vmatprep.subr.mxu0 0.0
  %489 = vmatpush1.msra.mxu0 0.0
  %490 = vmatprep.subr.mxu0 0.0
  %491 = vmatpush1.msra.mxu0 0.0
  %492 = vmatprep.subr.mxu0 0.0
  %493 = vmatpush1.msra.mxu0 0.0
  %494 = vmatprep.subr.mxu0 0.0
  %495 = vmatpush1.msra.mxu0 0.0
  %496 = vmatprep.subr.mxu0 0.0
  %497 = vmatpush1.msra.mxu0 0.0
  %498 = vmatprep.subr.mxu0 0.0
  %499 = vmatpush1.msra.mxu0 0.0
  %500 = vmatprep.subr.mxu0 0.0
  %501 = vmatpush1.msra.mxu0 0.0
  %502 = vmatprep.subr.mxu0 0.0
  %503 = vmatpush1.msra.mxu0 0.0
  %504 = vmatprep.subr.mxu0 0.0
  %505 = vmatpush1.msra.mxu0 0.0
  %506 = vmatprep.subr.mxu0 0.0
  %507 = vmatpush1.msra.mxu0 0.0
  %508 = vmatprep.subr.mxu0 0.0
  %509 = vmatpush1.msra.mxu0 0.0
  %510 = vmatprep.subr.mxu0 0.0
  %511 = vmatpush1.msra.mxu0 0.0
  %512 = vmatprep.subr.mxu0 0.0
  %513 = vmatpush1.msra.mxu0 0.0
  %514 = vmatprep.subr.mxu0 0.0
  %515 = vmatpush1.msra.mxu0 0.0
  %516 = vmatprep.mubr.f32.mxu0 0.0
  %517 = vmatmul.mubr.f32.gmra.mrb[0].mxu0 %v450
  %v518 = vpop.f32.mrb[0].mxu0
  %v519 = vadd.f32 0.0, %v518
  %v520 = vpop.f32.mrb[0].mxu0
  %v521 = vadd.f32 0.0, %v520
  %522 = vdwg.mxu0
  %v523 = vadd.f32 %v183, %v519
  %v524 = vadd.f32 %v185, %v521
  %v525 = vxor.u32 %v523, 2147483648
  %v526 = vxor.u32 %v524, 2147483648
  %v527 = vmul.f32 %v525, 1.442695
  %v528 = vpow.pop %v527
  %v529 = vmul.f32 %v526, 1.442695
  %v530 = vpow.pop %v529
  %v531 = vadd.f32 %v528, 1.0
  %v532 = vadd.f32 %v530, 1.0
  %v533 = vrcp.pop %v531
  %v534 = vmul.f32 1.0, %v533
  %v535 = vrcp.pop %v532
  %v536 = vmul.f32 1.0, %v535
  %v537 = vtanh.pop %v524
  %v538 = vmul.f32 %v534, %v444
  %v539 = vmul.f32 %v534, %v537
  %541 = vrot.lane.b32.xlu0 %v539, 64
  %v542 = vpop.permute.xlu0 %541
  %v544 = vadd.f32 %v538, %v542
  %v545 = vtanh.pop %v544
  %v546 = vmul.f32 %v536, %v545
  %548 = vrot.lane.b32.xlu0 %v546, 64
  %v549 = vpop.permute.xlu0 %548
  %v550 = vsel %vm249, %v549, 0
  %552 = vmatprep.subr.mxu0 %v30
  %553 = vmatpush1.msra.mxu0 %v29
  %554 = vmatprep.subr.mxu0 %v32
  %555 = vmatpush1.msra.mxu0 %v31
  %556 = vmatprep.subr.mxu0 %v34
  %557 = vmatpush1.msra.mxu0 %v33
  %558 = vmatprep.subr.mxu0 %v36
  %559 = vmatpush1.msra.mxu0 %v35
  %560 = vmatprep.subr.mxu0 %v38
  %561 = vmatpush1.msra.mxu0 %v37
  %562 = vmatprep.subr.mxu0 %v40
  %563 = vmatpush1.msra.mxu0 %v39
  %564 = vmatprep.subr.mxu0 %v42
  %565 = vmatpush1.msra.mxu0 %v41
  %566 = vmatprep.subr.mxu0 %v44
  %567 = vmatpush1.msra.mxu0 %v43
  %568 = vmatprep.subr.mxu0 0.0
  %569 = vmatpush1.msra.mxu0 0.0
  %570 = vmatprep.subr.mxu0 0.0
  %571 = vmatpush1.msra.mxu0 0.0
  %572 = vmatprep.subr.mxu0 0.0
  %573 = vmatpush1.msra.mxu0 0.0
  %574 = vmatprep.subr.mxu0 0.0
  %575 = vmatpush1.msra.mxu0 0.0
  %576 = vmatprep.subr.mxu0 0.0
  %577 = vmatpush1.msra.mxu0 0.0
  %578 = vmatprep.subr.mxu0 0.0
  %579 = vmatpush1.msra.mxu0 0.0
  %580 = vmatprep.subr.mxu0 0.0
  %581 = vmatpush1.msra.mxu0 0.0
  %582 = vmatprep.subr.mxu0 0.0
  %583 = vmatpush1.msra.mxu0 0.0
  %584 = vmatprep.subr.mxu0 0.0
  %585 = vmatpush1.msra.mxu0 0.0
  %586 = vmatprep.subr.mxu0 0.0
  %587 = vmatpush1.msra.mxu0 0.0
  %588 = vmatprep.subr.mxu0 0.0
  %589 = vmatpush1.msra.mxu0 0.0
  %590 = vmatprep.subr.mxu0 0.0
  %591 = vmatpush1.msra.mxu0 0.0
  %592 = vmatprep.subr.mxu0 0.0
  %593 = vmatpush1.msra.mxu0 0.0
  %594 = vmatprep.subr.mxu0 0.0
  %595 = vmatpush1.msra.mxu0 0.0
  %596 = vmatprep.subr.mxu0 0.0
  %597 = vmatpush1.msra.mxu0 0.0
  %598 = vmatprep.subr.mxu0 0.0
  %599 = vmatpush1.msra.mxu0 0.0
  %600 = vmatprep.subr.mxu0 0.0
  %601 = vmatpush1.msra.mxu0 0.0
  %602 = vmatprep.subr.mxu0 0.0
  %603 = vmatpush1.msra.mxu0 0.0
  %604 = vmatprep.subr.mxu0 0.0
  %605 = vmatpush1.msra.mxu0 0.0
  %606 = vmatprep.subr.mxu0 0.0
  %607 = vmatpush1.msra.mxu0 0.0
  %608 = vmatprep.subr.mxu0 0.0
  %609 = vmatpush1.msra.mxu0 0.0
  %610 = vmatprep.subr.mxu0 0.0
  %611 = vmatpush1.msra.mxu0 0.0
  %612 = vmatprep.subr.mxu0 0.0
  %613 = vmatpush1.msra.mxu0 0.0
  %614 = vmatprep.subr.mxu0 0.0
  %615 = vmatpush1.msra.mxu0 0.0
  %616 = vmatprep.mubr.f32.mxu0 0.0
  %617 = vmatmul.mubr.f32.gmra.mrb[0].mxu0 %v550
  %v618 = vpop.f32.mrb[0].mxu0
  %v619 = vadd.f32 0.0, %v618
  %v620 = vpop.f32.mrb[0].mxu0
  %v621 = vadd.f32 0.0, %v620
  %622 = vdwg.mxu0
  %v623 = vadd.f32 %v189, %v619
  %v624 = vadd.f32 %v191, %v621
  %v625 = vxor.u32 %v623, 2147483648
  %v626 = vxor.u32 %v624, 2147483648
  %v627 = vmul.f32 %v625, 1.442695
  %v628 = vpow.pop %v627
  %v629 = vmul.f32 %v626, 1.442695
  %v630 = vpow.pop %v629
  %v631 = vadd.f32 %v628, 1.0
  %v632 = vadd.f32 %v630, 1.0
  %v633 = vrcp.pop %v631
  %v634 = vmul.f32 1.0, %v633
  %v635 = vrcp.pop %v632
  %v636 = vmul.f32 1.0, %v635
  %v637 = vtanh.pop %v624
  %v638 = vmul.f32 %v634, %v544
  %v639 = vmul.f32 %v634, %v637
  %641 = vrot.lane.b32.xlu0 %v639, 64
  %v642 = vpop.permute.xlu0 %641
  %v644 = vadd.f32 %v638, %v642
  %v645 = vtanh.pop %v644
  %v646 = vmul.f32 %v636, %v645
  %648 = vrot.lane.b32.xlu0 %v646, 64
  %v649 = vpop.permute.xlu0 %648
  %v650 = vsel %vm249, %v649, 0
  %652 = vmatprep.subr.mxu0 %v30
  %653 = vmatpush1.msra.mxu0 %v29
  %654 = vmatprep.subr.mxu0 %v32
  %655 = vmatpush1.msra.mxu0 %v31
  %656 = vmatprep.subr.mxu0 %v34
  %657 = vmatpush1.msra.mxu0 %v33
  %658 = vmatprep.subr.mxu0 %v36
  %659 = vmatpush1.msra.mxu0 %v35
  %660 = vmatprep.subr.mxu0 %v38
  %661 = vmatpush1.msra.mxu0 %v37
  %662 = vmatprep.subr.mxu0 %v40
  %663 = vmatpush1.msra.mxu0 %v39
  %664 = vmatprep.subr.mxu0 %v42
  %665 = vmatpush1.msra.mxu0 %v41
  %666 = vmatprep.subr.mxu0 %v44
  %667 = vmatpush1.msra.mxu0 %v43
  %668 = vmatprep.subr.mxu0 0.0
  %669 = vmatpush1.msra.mxu0 0.0
  %670 = vmatprep.subr.mxu0 0.0
  %671 = vmatpush1.msra.mxu0 0.0
  %672 = vmatprep.subr.mxu0 0.0
  %673 = vmatpush1.msra.mxu0 0.0
  %674 = vmatprep.subr.mxu0 0.0
  %675 = vmatpush1.msra.mxu0 0.0
  %676 = vmatprep.subr.mxu0 0.0
  %677 = vmatpush1.msra.mxu0 0.0
  %678 = vmatprep.subr.mxu0 0.0
  %679 = vmatpush1.msra.mxu0 0.0
  %680 = vmatprep.subr.mxu0 0.0
  %681 = vmatpush1.msra.mxu0 0.0
  %682 = vmatprep.subr.mxu0 0.0
  %683 = vmatpush1.msra.mxu0 0.0
  %684 = vmatprep.subr.mxu0 0.0
  %685 = vmatpush1.msra.mxu0 0.0
  %686 = vmatprep.subr.mxu0 0.0
  %687 = vmatpush1.msra.mxu0 0.0
  %688 = vmatprep.subr.mxu0 0.0
  %689 = vmatpush1.msra.mxu0 0.0
  %690 = vmatprep.subr.mxu0 0.0
  %691 = vmatpush1.msra.mxu0 0.0
  %692 = vmatprep.subr.mxu0 0.0
  %693 = vmatpush1.msra.mxu0 0.0
  %694 = vmatprep.subr.mxu0 0.0
  %695 = vmatpush1.msra.mxu0 0.0
  %696 = vmatprep.subr.mxu0 0.0
  %697 = vmatpush1.msra.mxu0 0.0
  %698 = vmatprep.subr.mxu0 0.0
  %699 = vmatpush1.msra.mxu0 0.0
  %700 = vmatprep.subr.mxu0 0.0
  %701 = vmatpush1.msra.mxu0 0.0
  %702 = vmatprep.subr.mxu0 0.0
  %703 = vmatpush1.msra.mxu0 0.0
  %704 = vmatprep.subr.mxu0 0.0
  %705 = vmatpush1.msra.mxu0 0.0
  %706 = vmatprep.subr.mxu0 0.0
  %707 = vmatpush1.msra.mxu0 0.0
  %708 = vmatprep.subr.mxu0 0.0
  %709 = vmatpush1.msra.mxu0 0.0
  %710 = vmatprep.subr.mxu0 0.0
  %711 = vmatpush1.msra.mxu0 0.0
  %712 = vmatprep.subr.mxu0 0.0
  %713 = vmatpush1.msra.mxu0 0.0
  %714 = vmatprep.subr.mxu0 0.0
  %715 = vmatpush1.msra.mxu0 0.0
  %716 = vmatprep.mubr.f32.mxu0 0.0
  %717 = vmatmul.mubr.f32.gmra.mrb[0].mxu0 %v650
  %v718 = vpop.f32.mrb[0].mxu0
  %v719 = vadd.f32 0.0, %v718
  %v720 = vpop.f32.mrb[0].mxu0
  %v721 = vadd.f32 0.0, %v720
  %722 = vdwg.mxu0
  %v723 = vadd.f32 %v195, %v719
  %v724 = vadd.f32 %v197, %v721
  %v725 = vxor.u32 %v723, 2147483648
  %v726 = vxor.u32 %v724, 2147483648
  %v727 = vmul.f32 %v725, 1.442695
  %v728 = vpow.pop %v727
  %v729 = vmul.f32 %v726, 1.442695
  %v730 = vpow.pop %v729
  %v731 = vadd.f32 %v728, 1.0
  %v732 = vadd.f32 %v730, 1.0
  %v733 = vrcp.pop %v731
  %v734 = vmul.f32 1.0, %v733
  %v735 = vrcp.pop %v732
  %v736 = vmul.f32 1.0, %v735
  %v737 = vtanh.pop %v724
  %v738 = vmul.f32 %v734, %v644
  %v739 = vmul.f32 %v734, %v737
  %741 = vrot.lane.b32.xlu0 %v739, 64
  %v742 = vpop.permute.xlu0 %741
  %v744 = vadd.f32 %v738, %v742
  %v745 = vtanh.pop %v744
  %v746 = vmul.f32 %v736, %v745
  %748 = vrot.lane.b32.xlu0 %v746, 64
  %v749 = vpop.permute.xlu0 %748
  %v750 = vsel %vm249, %v749, 0
  %752 = vmatprep.subr.mxu0 %v30
  %753 = vmatpush1.msra.mxu0 %v29
  %754 = vmatprep.subr.mxu0 %v32
  %755 = vmatpush1.msra.mxu0 %v31
  %756 = vmatprep.subr.mxu0 %v34
  %757 = vmatpush1.msra.mxu0 %v33
  %758 = vmatprep.subr.mxu0 %v36
  %759 = vmatpush1.msra.mxu0 %v35
  %760 = vmatprep.subr.mxu0 %v38
  %761 = vmatpush1.msra.mxu0 %v37
  %762 = vmatprep.subr.mxu0 %v40
  %763 = vmatpush1.msra.mxu0 %v39
  %764 = vmatprep.subr.mxu0 %v42
  %765 = vmatpush1.msra.mxu0 %v41
  %766 = vmatprep.subr.mxu0 %v44
  %767 = vmatpush1.msra.mxu0 %v43
  %768 = vmatprep.subr.mxu0 0.0
  %769 = vmatpush1.msra.mxu0 0.0
  %770 = vmatprep.subr.mxu0 0.0
  %771 = vmatpush1.msra.mxu0 0.0
  %772 = vmatprep.subr.mxu0 0.0
  %773 = vmatpush1.msra.mxu0 0.0
  %774 = vmatprep.subr.mxu0 0.0
  %775 = vmatpush1.msra.mxu0 0.0
  %776 = vmatprep.subr.mxu0 0.0
  %777 = vmatpush1.msra.mxu0 0.0
  %778 = vmatprep.subr.mxu0 0.0
  %779 = vmatpush1.msra.mxu0 0.0
  %780 = vmatprep.subr.mxu0 0.0
  %781 = vmatpush1.msra.mxu0 0.0
  %782 = vmatprep.subr.mxu0 0.0
  %783 = vmatpush1.msra.mxu0 0.0
  %784 = vmatprep.subr.mxu0 0.0
  %785 = vmatpush1.msra.mxu0 0.0
  %786 = vmatprep.subr.mxu0 0.0
  %787 = vmatpush1.msra.mxu0 0.0
  %788 = vmatprep.subr.mxu0 0.0
  %789 = vmatpush1.msra.mxu0 0.0
  %790 = vmatprep.subr.mxu0 0.0
  %791 = vmatpush1.msra.mxu0 0.0
  %792 = vmatprep.subr.mxu0 0.0
  %793 = vmatpush1.msra.mxu0 0.0
  %794 = vmatprep.subr.mxu0 0.0
  %795 = vmatpush1.msra.mxu0 0.0
  %796 = vmatprep.subr.mxu0 0.0
  %797 = vmatpush1.msra.mxu0 0.0
  %798 = vmatprep.subr.mxu0 0.0
  %799 = vmatpush1.msra.mxu0 0.0
  %800 = vmatprep.subr.mxu0 0.0
  %801 = vmatpush1.msra.mxu0 0.0
  %802 = vmatprep.subr.mxu0 0.0
  %803 = vmatpush1.msra.mxu0 0.0
  %804 = vmatprep.subr.mxu0 0.0
  %805 = vmatpush1.msra.mxu0 0.0
  %806 = vmatprep.subr.mxu0 0.0
  %807 = vmatpush1.msra.mxu0 0.0
  %808 = vmatprep.subr.mxu0 0.0
  %809 = vmatpush1.msra.mxu0 0.0
  %810 = vmatprep.subr.mxu0 0.0
  %811 = vmatpush1.msra.mxu0 0.0
  %812 = vmatprep.subr.mxu0 0.0
  %813 = vmatpush1.msra.mxu0 0.0
  %814 = vmatprep.subr.mxu0 0.0
  %815 = vmatpush1.msra.mxu0 0.0
  %816 = vmatprep.mubr.f32.mxu0 0.0
  %817 = vmatmul.mubr.f32.gmra.mrb[0].mxu0 %v750
  %v818 = vpop.f32.mrb[0].mxu0
  %v819 = vadd.f32 0.0, %v818
  %v820 = vpop.f32.mrb[0].mxu0
  %v821 = vadd.f32 0.0, %v820
  %822 = vdwg.mxu0
  %v823 = vadd.f32 %v201, %v819
  %v824 = vadd.f32 %v203, %v821
  %v825 = vxor.u32 %v823, 2147483648
  %v826 = vxor.u32 %v824, 2147483648
  %v827 = vmul.f32 %v825, 1.442695
  %v828 = vpow.pop %v827
  %v829 = vmul.f32 %v826, 1.442695
  %v830 = vpow.pop %v829
  %v831 = vadd.f32 %v828, 1.0
  %v832 = vadd.f32 %v830, 1.0
  %v833 = vrcp.pop %v831
  %v834 = vmul.f32 1.0, %v833
  %v835 = vrcp.pop %v832
  %v836 = vmul.f32 1.0, %v835
  %v837 = vtanh.pop %v824
  %v838 = vmul.f32 %v834, %v744
  %v839 = vmul.f32 %v834, %v837
  %841 = vrot.lane.b32.xlu0 %v839, 64
  %v842 = vpop.permute.xlu0 %841
  %v844 = vadd.f32 %v838, %v842
  %v845 = vtanh.pop %v844
  %v846 = vmul.f32 %v836, %v845
  %848 = vrot.lane.b32.xlu0 %v846, 64
  %v849 = vpop.permute.xlu0 %848
  %v850 = vsel %vm249, %v849, 0
  %852 = vmatprep.subr.mxu0 %v30
  %853 = vmatpush1.msra.mxu0 %v29
  %854 = vmatprep.subr.mxu0 %v32
  %855 = vmatpush1.msra.mxu0 %v31
  %856 = vmatprep.subr.mxu0 %v34
  %857 = vmatpush1.msra.mxu0 %v33
  %858 = vmatprep.subr.mxu0 %v36
  %859 = vmatpush1.msra.mxu0 %v35
  %860 = vmatprep.subr.mxu0 %v38
  %861 = vmatpush1.msra.mxu0 %v37
  %862 = vmatprep.subr.mxu0 %v40
  %863 = vmatpush1.msra.mxu0 %v39
  %864 = vmatprep.subr.mxu0 %v42
  %865 = vmatpush1.msra.mxu0 %v41
  %866 = vmatprep.subr.mxu0 %v44
  %867 = vmatpush1.msra.mxu0 %v43
  %868 = vmatprep.subr.mxu0 0.0
  %869 = vmatpush1.msra.mxu0 0.0
  %870 = vmatprep.subr.mxu0 0.0
  %871 = vmatpush1.msra.mxu0 0.0
  %872 = vmatprep.subr.mxu0 0.0
  %873 = vmatpush1.msra.mxu0 0.0
  %874 = vmatprep.subr.mxu0 0.0
  %875 = vmatpush1.msra.mxu0 0.0
  %876 = vmatprep.subr.mxu0 0.0
  %877 = vmatpush1.msra.mxu0 0.0
  %878 = vmatprep.subr.mxu0 0.0
  %879 = vmatpush1.msra.mxu0 0.0
  %880 = vmatprep.subr.mxu0 0.0
  %881 = vmatpush1.msra.mxu0 0.0
  %882 = vmatprep.subr.mxu0 0.0
  %883 = vmatpush1.msra.mxu0 0.0
  %884 = vmatprep.subr.mxu0 0.0
  %885 = vmatpush1.msra.mxu0 0.0
  %886 = vmatprep.subr.mxu0 0.0
  %887 = vmatpush1.msra.mxu0 0.0
  %888 = vmatprep.subr.mxu0 0.0
  %889 = vmatpush1.msra.mxu0 0.0
  %890 = vmatprep.subr.mxu0 0.0
  %891 = vmatpush1.msra.mxu0 0.0
  %892 = vmatprep.subr.mxu0 0.0
  %893 = vmatpush1.msra.mxu0 0.0
  %894 = vmatprep.subr.mxu0 0.0
  %895 = vmatpush1.msra.mxu0 0.0
  %896 = vmatprep.subr.mxu0 0.0
  %897 = vmatpush1.msra.mxu0 0.0
  %898 = vmatprep.subr.mxu0 0.0
  %899 = vmatpush1.msra.mxu0 0.0
  %900 = vmatprep.subr.mxu0 0.0
  %901 = vmatpush1.msra.mxu0 0.0
  %902 = vmatprep.subr.mxu0 0.0
  %903 = vmatpush1.msra.mxu0 0.0
  %904 = vmatprep.subr.mxu0 0.0
  %905 = vmatpush1.msra.mxu0 0.0
  %906 = vmatprep.subr.mxu0 0.0
  %907 = vmatpush1.msra.mxu0 0.0
  %908 = vmatprep.subr.mxu0 0.0
  %909 = vmatpush1.msra.mxu0 0.0
  %910 = vmatprep.subr.mxu0 0.0
  %911 = vmatpush1.msra.mxu0 0.0
  %912 = vmatprep.subr.mxu0 0.0
  %913 = vmatpush1.msra.mxu0 0.0
  %914 = vmatprep.subr.mxu0 0.0
  %915 = vmatpush1.msra.mxu0 0.0
  %916 = vmatprep.mubr.f32.mxu0 0.0
  %917 = vmatmul.mubr.f32.gmra.mrb[0].mxu0 %v850
  %v918 = vpop.f32.mrb[0].mxu0
  %v919 = vadd.f32 0.0, %v918
  %v920 = vpop.f32.mrb[0].mxu0
  %v921 = vadd.f32 0.0, %v920
  %922 = vdwg.mxu0
  %v923 = vadd.f32 %v207, %v919
  %v924 = vadd.f32 %v209, %v921
  %v925 = vxor.u32 %v923, 2147483648
  %v926 = vxor.u32 %v924, 2147483648
  %v927 = vmul.f32 %v925, 1.442695
  %v928 = vpow.pop %v927
  %v929 = vmul.f32 %v926, 1.442695
  %v930 = vpow.pop %v929
  %v931 = vadd.f32 %v928, 1.0
  %v932 = vadd.f32 %v930, 1.0
  %v933 = vrcp.pop %v931
  %v934 = vmul.f32 1.0, %v933
  %v935 = vrcp.pop %v932
  %v936 = vmul.f32 1.0, %v935
  %v937 = vtanh.pop %v924
  %v938 = vmul.f32 %v934, %v844
  %v939 = vmul.f32 %v934, %v937
  %941 = vrot.lane.b32.xlu0 %v939, 64
  %v942 = vpop.permute.xlu0 %941
  %v944 = vadd.f32 %v938, %v942
  %v945 = vtanh.pop %v944
  %v946 = vmul.f32 %v936, %v945
  %948 = vrot.lane.b32.xlu0 %v946, 64
  %v949 = vpop.permute.xlu0 %948
  %v950 = vsel %vm249, %v949, 0
  %952 = vmatprep.subr.mxu0 %v30
  %953 = vmatpush1.msra.mxu0 %v29
  %954 = vmatprep.subr.mxu0 %v32
  %955 = vmatpush1.msra.mxu0 %v31
  %956 = vmatprep.subr.mxu0 %v34
  %957 = vmatpush1.msra.mxu0 %v33
  %958 = vmatprep.subr.mxu0 %v36
  %959 = vmatpush1.msra.mxu0 %v35
  %960 = vmatprep.subr.mxu0 %v38
  %961 = vmatpush1.msra.mxu0 %v37
  %962 = vmatprep.subr.mxu0 %v40
  %963 = vmatpush1.msra.mxu0 %v39
  %964 = vmatprep.subr.mxu0 %v42
  %965 = vmatpush1.msra.mxu0 %v41
  %966 = vmatprep.subr.mxu0 %v44
  %967 = vmatpush1.msra.mxu0 %v43
  %968 = vmatprep.subr.mxu0 0.0
  %969 = vmatpush1.msra.mxu0 0.0
  %970 = vmatprep.subr.mxu0 0.0
  %971 = vmatpush1.msra.mxu0 0.0
  %972 = vmatprep.subr.mxu0 0.0
  %973 = vmatpush1.msra.mxu0 0.0
  %974 = vmatprep.subr.mxu0 0.0
  %975 = vmatpush1.msra.mxu0 0.0
  %976 = vmatprep.subr.mxu0 0.0
  %977 = vmatpush1.msra.mxu0 0.0
  %978 = vmatprep.subr.mxu0 0.0
  %979 = vmatpush1.msra.mxu0 0.0
  %980 = vmatprep.subr.mxu0 0.0
  %981 = vmatpush1.msra.mxu0 0.0
  %982 = vmatprep.subr.mxu0 0.0
  %983 = vmatpush1.msra.mxu0 0.0
  %984 = vmatprep.subr.mxu0 0.0
  %985 = vmatpush1.msra.mxu0 0.0
  %986 = vmatprep.subr.mxu0 0.0
  %987 = vmatpush1.msra.mxu0 0.0
  %988 = vmatprep.subr.mxu0 0.0
  %989 = vmatpush1.msra.mxu0 0.0
  %990 = vmatprep.subr.mxu0 0.0
  %991 = vmatpush1.msra.mxu0 0.0
  %992 = vmatprep.subr.mxu0 0.0
  %993 = vmatpush1.msra.mxu0 0.0
  %994 = vmatprep.subr.mxu0 0.0
  %995 = vmatpush1.msra.mxu0 0.0
  %996 = vmatprep.subr.mxu0 0.0
  %997 = vmatpush1.msra.mxu0 0.0
  %998 = vmatprep.subr.mxu0 0.0
  %999 = vmatpush1.msra.mxu0 0.0
  %1000 = vmatprep.subr.mxu0 0.0
  %1001 = vmatpush1.msra.mxu0 0.0
  %1002 = vmatprep.subr.mxu0 0.0
  %1003 = vmatpush1.msra.mxu0 0.0
  %1004 = vmatprep.subr.mxu0 0.0
  %1005 = vmatpush1.msra.mxu0 0.0
  %1006 = vmatprep.subr.mxu0 0.0
  %1007 = vmatpush1.msra.mxu0 0.0
  %1008 = vmatprep.subr.mxu0 0.0
  %1009 = vmatpush1.msra.mxu0 0.0
  %1010 = vmatprep.subr.mxu0 0.0
  %1011 = vmatpush1.msra.mxu0 0.0
  %1012 = vmatprep.subr.mxu0 0.0
  %1013 = vmatpush1.msra.mxu0 0.0
  %1014 = vmatprep.subr.mxu0 0.0
  %1015 = vmatpush1.msra.mxu0 0.0
  %1016 = vmatprep.mubr.f32.mxu0 0.0
  %1017 = vmatmul.mubr.f32.gmra.mrb[0].mxu0 %v950
  %v1018 = vpop.f32.mrb[0].mxu0
  %v1019 = vadd.f32 0.0, %v1018
  %v1020 = vpop.f32.mrb[0].mxu0
  %v1021 = vadd.f32 0.0, %v1020
  %1022 = vdwg.mxu0
  %v1023 = vadd.f32 %v213, %v1019
  %v1024 = vadd.f32 %v215, %v1021
  %v1025 = vxor.u32 %v1023, 2147483648
  %v1026 = vxor.u32 %v1024, 2147483648
  %v1027 = vmul.f32 %v1025, 1.442695
  %v1028 = vpow.pop %v1027
  %v1029 = vmul.f32 %v1026, 1.442695
  %v1030 = vpow.pop %v1029
  %v1031 = vadd.f32 %v1028, 1.0
  %v1032 = vadd.f32 %v1030, 1.0
  %v1033 = vrcp.pop %v1031
  %v1034 = vmul.f32 1.0, %v1033
  %v1035 = vrcp.pop %v1032
  %v1036 = vmul.f32 1.0, %v1035
  %v1037 = vtanh.pop %v1024
  %v1038 = vmul.f32 %v1034, %v944
  %v1039 = vmul.f32 %v1034, %v1037
  %1041 = vrot.lane.b32.xlu0 %v1039, 64
  %v1042 = vpop.permute.xlu0 %1041
  %v1044 = vadd.f32 %v1038, %v1042
  %v1045 = vtanh.pop %v1044
  %v1046 = vmul.f32 %v1036, %v1045
  %1047 = vrot.lane.b32.xlu0 %v946, 32
  %v1048 = vpop.permute.xlu0 %1047
  %1051 = vrot.lane.b32.xlu0 %v1046, 64
  %v1052 = vpop.permute.xlu0 %1051
  %v1054 = vsel %vm237, %v1048, %v1052
  %v1055 = vtanh.pop %v1054
  %v1056 = vld [vmem:[%s4] sm:$0xff]
  %v1057 = vld [vmem:[%s4 + $0x8] sm:$0xff]
  %v1058 = vld [vmem:[%s4 + $0x10] sm:$0xff]
  %v1059 = vld [vmem:[%s4 + $0x18] sm:$0xff]
  %v1060 = vld [vmem:[%s4 + $0x20] sm:$0xff]
  %v1061 = vld [vmem:[%s4 + $0x28] sm:$0xff]
  %v1062 = vld [vmem:[%s4 + $0x30] sm:$0xff]
  %v1063 = vld [vmem:[%s4 + $0x38] sm:$0xff]
  %v1064 = vld [vmem:[%s5] sm:$0x1]
  %v1066 = vlaneseq
  %v1067 = vshrl.u32 %v1066, 7
  %v1068 = vsub.s32 0, %v1067
  %v1069 = vrot.slane %v1064, %v1068
  %v1072 = vsel %vm249, %v1055, 0
  %1074 = vmatprep.subr.mxu0 0.0
  %1075 = vmatpush1.msra.mxu0 %v1056
  %1076 = vmatprep.subr.mxu0 0.0
  %1077 = vmatpush1.msra.mxu0 %v1057
  %1078 = vmatprep.subr.mxu0 0.0
  %1079 = vmatpush1.msra.mxu0 %v1058
  %1080 = vmatprep.subr.mxu0 0.0
  %1081 = vmatpush1.msra.mxu0 %v1059
  %1082 = vmatprep.subr.mxu0 0.0
  %1083 = vmatpush1.msra.mxu0 %v1060
  %1084 = vmatprep.subr.mxu0 0.0
  %1085 = vmatpush1.msra.mxu0 %v1061
  %1086 = vmatprep.subr.mxu0 0.0
  %1087 = vmatpush1.msra.mxu0 %v1062
  %1088 = vmatprep.subr.mxu0 0.0
  %1089 = vmatpush1.msra.mxu0 %v1063
  %1090 = vmatprep.subr.mxu0 0.0
  %1091 = vmatpush1.msra.mxu0 0.0
  %1092 = vmatprep.subr.mxu0 0.0
  %1093 = vmatpush1.msra.mxu0 0.0
  %1094 = vmatprep.subr.mxu0 0.0
  %1095 = vmatpush1.msra.mxu0 0.0
  %1096 = vmatprep.subr.mxu0 0.0
  %1097 = vmatpush1.msra.mxu0 0.0
  %1098 = vmatprep.subr.mxu0 0.0
  %1099 = vmatpush1.msra.mxu0 0.0
  %1100 = vmatprep.subr.mxu0 0.0
  %1101 = vmatpush1.msra.mxu0 0.0
  %1102 = vmatprep.subr.mxu0 0.0
  %1103 = vmatpush1.msra.mxu0 0.0
  %1104 = vmatprep.subr.mxu0 0.0
  %1105 = vmatpush1.msra.mxu0 0.0
  %1106 = vmatprep.subr.mxu0 0.0
  %1107 = vmatpush1.msra.mxu0 0.0
  %1108 = vmatprep.subr.mxu0 0.0
  %1109 = vmatpush1.msra.mxu0 0.0
  %1110 = vmatprep.subr.mxu0 0.0
  %1111 = vmatpush1.msra.mxu0 0.0
  %1112 = vmatprep.subr.mxu0 0.0
  %1113 = vmatpush1.msra.mxu0 0.0
  %1114 = vmatprep.subr.mxu0 0.0
  %1115 = vmatpush1.msra.mxu0 0.0
  %1116 = vmatprep.subr.mxu0 0.0
  %1117 = vmatpush1.msra.mxu0 0.0
  %1118 = vmatprep.subr.mxu0 0.0
  %1119 = vmatpush1.msra.mxu0 0.0
  %1120 = vmatprep.subr.mxu0 0.0
  %1121 = vmatpush1.msra.mxu0 0.0
  %1122 = vmatprep.subr.mxu0 0.0
  %1123 = vmatpush1.msra.mxu0 0.0
  %1124 = vmatprep.subr.mxu0 0.0
  %1125 = vmatpush1.msra.mxu0 0.0
  %1126 = vmatprep.subr.mxu0 0.0
  %1127 = vmatpush1.msra.mxu0 0.0
  %1128 = vmatprep.subr.mxu0 0.0
  %1129 = vmatpush1.msra.mxu0 0.0
  %1130 = vmatprep.subr.mxu0 0.0
  %1131 = vmatpush1.msra.mxu0 0.0
  %1132 = vmatprep.subr.mxu0 0.0
  %1133 = vmatpush1.msra.mxu0 0.0
  %1134 = vmatprep.subr.mxu0 0.0
  %1135 = vmatpush1.msra.mxu0 0.0
  %1136 = vmatprep.subr.mxu0 0.0
  %1137 = vmatpush1.msra.mxu0 0.0
  %1138 = vmatprep.mubr.f32.mxu0 0.0
  %1139 = vmatmul.mubr.f32.gmra.mrb[0].mxu0 %v1072
  %v1140 = vpop.f32.mrb[0].mxu0
  %v1141 = vadd.f32 %v1069, %v1140
  %v1142 = vpop.f32.mrb[0].mxu0
  %1143 = vdwg.mxu0
  %v1144 = vtanh.pop %v1141
  %v1145 = vld [vmem:[%s6] sm:$0xff]
  %v1146 = vld [vmem:[%s6 + $0x8] sm:$0xff]
  %v1147 = vld [vmem:[%s6 + $0x10] sm:$0xff]
  %v1148 = vld [vmem:[%s6 + $0x18] sm:$0xff]
  %v1149 = vld [vmem:[%s7] sm:$0x1]
  %v1151 = vlaneseq
  %v1152 = vshrl.u32 %v1151, 7
  %v1153 = vsub.s32 0, %v1152
  %v1154 = vrot.slane %v1149, %v1153
  %v1157 = vsel %vm237, %v1144, 0
  %1159 = vmatprep.subr.mxu0 0.0
  %1160 = vmatpush1.msra.mxu0 %v1145
  %1161 = vmatprep.subr.mxu0 0.0
  %1162 = vmatpush1.msra.mxu0 %v1146
  %1163 = vmatprep.subr.mxu0 0.0
  %1164 = vmatpush1.msra.mxu0 %v1147
  %1165 = vmatprep.subr.mxu0 0.0
  %1166 = vmatpush1.msra.mxu0 %v1148
  %1167 = vmatprep.subr.mxu0 0.0
  %1168 = vmatpush1.msra.mxu0 0.0
  %1169 = vmatprep.subr.mxu0 0.0
  %1170 = vmatpush1.msra.mxu0 0.0
  %1171 = vmatprep.subr.mxu0 0.0
  %1172 = vmatpush1.msra.mxu0 0.0
  %1173 = vmatprep.subr.mxu0 0.0
  %1174 = vmatpush1.msra.mxu0 0.0
  %1175 = vmatprep.subr.mxu0 0.0
  %1176 = vmatpush1.msra.mxu0 0.0
  %1177 = vmatprep.subr.mxu0 0.0
  %1178 = vmatpush1.msra.mxu0 0.0
  %1179 = vmatprep.subr.mxu0 0.0
  %1180 = vmatpush1.msra.mxu0 0.0
  %1181 = vmatprep.subr.mxu0 0.0
  %1182 = vmatpush1.msra.mxu0 0.0
  %1183 = vmatprep.subr.mxu0 0.0
  %1184 = vmatpush1.msra.mxu0 0.0
  %1185 = vmatprep.subr.mxu0 0.0
  %1186 = vmatpush1.msra.mxu0 0.0
  %1187 = vmatprep.subr.mxu0 0.0
  %1188 = vmatpush1.msra.mxu0 0.0
  %1189 = vmatprep.subr.mxu0 0.0
  %1190 = vmatpush1.msra.mxu0 0.0
  %1191 = vmatprep.subr.mxu0 0.0
  %1192 = vmatpush1.msra.mxu0 0.0
  %1193 = vmatprep.subr.mxu0 0.0
  %1194 = vmatpush1.msra.mxu0 0.0
  %1195 = vmatprep.subr.mxu0 0.0
  %1196 = vmatpush1.msra.mxu0 0.0
  %1197 = vmatprep.subr.mxu0 0.0
  %1198 = vmatpush1.msra.mxu0 0.0
  %1199 = vmatprep.subr.mxu0 0.0
  %1200 = vmatpush1.msra.mxu0 0.0
  %1201 = vmatprep.subr.mxu0 0.0
  %1202 = vmatpush1.msra.mxu0 0.0
  %1203 = vmatprep.subr.mxu0 0.0
  %1204 = vmatpush1.msra.mxu0 0.0
  %1205 = vmatprep.subr.mxu0 0.0
  %1206 = vmatpush1.msra.mxu0 0.0
  %1207 = vmatprep.subr.mxu0 0.0
  %1208 = vmatpush1.msra.mxu0 0.0
  %1209 = vmatprep.subr.mxu0 0.0
  %1210 = vmatpush1.msra.mxu0 0.0
  %1211 = vmatprep.subr.mxu0 0.0
  %1212 = vmatpush1.msra.mxu0 0.0
  %1213 = vmatprep.subr.mxu0 0.0
  %1214 = vmatpush1.msra.mxu0 0.0
  %1215 = vmatprep.subr.mxu0 0.0
  %1216 = vmatpush1.msra.mxu0 0.0
  %1217 = vmatprep.subr.mxu0 0.0
  %1218 = vmatpush1.msra.mxu0 0.0
  %1219 = vmatprep.subr.mxu0 0.0
  %1220 = vmatpush1.msra.mxu0 0.0
  %1221 = vmatprep.subr.mxu0 0.0
  %1222 = vmatpush1.msra.mxu0 0.0
  %1223 = vmatprep.mubr.f32.mxu0 0.0
  %1224 = vmatmul.mubr.f32.gmra.mrb[0].mxu0 %v1157
  %v1225 = vpop.f32.mrb[0].mxu0
  %v1226 = vadd.f32 %v1154, %v1225
  %v1227 = vpop.f32.mrb[0].mxu0
  %1228 = vdwg.mxu0
  %vm1229 = vcmask 31744
  %1230 = vst.msk [vmem:[%s8] sm:$0xff] %vm1229, %v1226
  // Predicated region
  $region34: #{tpu_custom_call.1} parent=0 // pred_check
    _
  $region35: #{tpu_custom_call.1} parent=0 // pred_check_branch
    %1232 = sbr.rel (0) target = $region37
  $region36: #{tpu_custom_call.1} parent=0 // pred_region
    _
  $region37: #{tpu_custom_call.1} parent=0 // pred_fallthru
    _
  // Predicated region
  $region38: #{tpu_custom_call.1} parent=0 // pred_check
    _
  $region39: #{tpu_custom_call.1} parent=0 // pred_check_branch
    %1234 = sbr.rel (0) target = $region41
  $region40: #{tpu_custom_call.1} parent=0 // pred_region
    _
  $region41: #{tpu_custom_call.1} parent=0 // pred_fallthru
    _

</llo_original>
